<compile_context>
chip_gen: v7x
topology: tpu7x:2x2x1
jax: 0.10.0
libtpu: 0.0.40
codegen_flags: <defaults>
</compile_context>

<pallas_src>
import jax
import jax.numpy as jnp
from jax.experimental import pallas as pl
from jax.experimental.pallas import tpu as pltpu

# ----- configuration (mirrors args) -----
BATCH = 8                       # args.batch_size
EMB_DIM = 128                   # args.embedding_dim
TIMESTEPS = 8                   # args.timesteps
FEAT = EMB_DIM // TIMESTEPS     # LSTM input_size = 16
HIDDEN_SIZE = 64                # args.hidden_size
NUM_LAYERS = 1                  # args.num_layers
LSTM_H = HIDDEN_SIZE // 2 * NUM_LAYERS   # 32 (per-LSTM hidden size)
NUM_ENTITIES = 256
NUM_RELATIONS = 64

H2 = 2 * LSTM_H                 # 64  fused state width [h1 | h2]
G = 8 * LSTM_H                  # 256 fused gate width (2 streams x 4 gates)
SIG_W = 6 * LSTM_H              # 192 sigmoid slab (i1,i2,f1,f2,o1,o2)
VEC_W = max(G, NUM_ENTITIES, EMB_DIM)   # common width of the packed bias rows


# ----------------------------- kernel -----------------------------------------
def dual_lstm_kernel(x_ref, win_ref, wrec_ref, wscore_ref, vecs_ref, out_ref):
    B, T = BATCH, TIMESTEPS

    vecs = vecs_ref[...]                              # (4, VEC_W) f32
    gate_bias = vecs[0:1, 0:G]                        # (1, 256) fused bih+bhh
    out_bias = vecs[1:2, 0:NUM_ENTITIES]              # (1, 256) fcb@E^T + b
    ent_colsum = vecs[2:3, 0:NUM_ENTITIES]            # (1, 256) sum_d emb_e[:, d]
    fc_bias = vecs[3:4, 0:EMB_DIM]                    # (1, 128) fcb

    # (1) Input projection for ALL timesteps of BOTH streams in one matmul.
    #     x_ref: (T*B, 2*FEAT), win: block-diag (2*FEAT, G).  Timestep t lives in
    #     the contiguous sublane slab rows [t*B, (t+1)*B).
    xproj = jnp.dot(x_ref[...], win_ref[...],
                    preferred_element_type=jnp.float32) + gate_bias   # (T*B, 256)

    w_hh = wrec_ref[:, 0:G]                           # (64, 256) fused block-diag W_hh
    fc_w = wrec_ref[:, G:G + EMB_DIM]                 # (64, 128) fc weight (transposed)

    # (2) Fused recurrence: one (B,64)x(64,256) matmul per step for both LSTMs.
    #     Gate column order: [i1 i2 | f1 f2 | o1 o2 | g1 g2], each block 32 wide.
    h = jnp.zeros((B, H2), jnp.float32)
    c = jnp.zeros((B, H2), jnp.float32)
    for t in range(T):                                # static & small -> unrolled
        gates = (jnp.dot(h, w_hh, preferred_element_type=jnp.float32)
                 + xproj[t * B:(t + 1) * B, :])
        sig = jax.nn.sigmoid(gates[:, 0:SIG_W])       # one EUP slab (8,192)
        g = jnp.tanh(gates[:, SIG_W:G])               # one EUP slab (8,64) = [g1|g2]
        i = sig[:, 0:H2]                              # [i1|i2]
        f = sig[:, H2:2 * H2]                         # [f1|f2]
        o = sig[:, 2 * H2:3 * H2]                     # [o1|o2]
        c = f * c + i * g
        h = o * jnp.tanh(c)
    # h == torch.cat([hn1, hn2], 2).view(B, hidden_size)

    # (3) lse path: the small fc matmul only feeds logsumexp.
    x_fc = jnp.dot(h, fc_w, preferred_element_type=jnp.float32) + fc_bias   # (8, 128)
    m = jnp.max(x_fc, axis=1, keepdims=True)
    lse = jnp.log(jnp.sum(jnp.exp(x_fc - m), axis=1, keepdims=True)) + m    # (8, 1)

    # (4) scoring path (independent of lse until the final subtract):
    #     (x - lse) @ E^T + b == h @ (fc_w@E^T) + (fcb@E^T + b) - lse * colsum(E)
    base = jnp.dot(h.astype(wscore_ref.dtype), wscore_ref[...],
                   preferred_element_type=jnp.float32)                      # (8, 256)
    out_ref[...] = jax.nn.sigmoid(base + out_bias - lse * ent_colsum)


# -------------------------- parameter packing ----------------------------------
def _fuse_gate_block_diag(w1t, w2t):
    """w1t: (d1, 4H) cols [i f g o]; w2t: (d2, 4H).  Returns block-diagonal
    (d1+d2, 8H) with fused gate column order [i1 i2 f1 f2 o1 o2 g1 g2]."""
    Hh = LSTM_H
    d1, d2 = w1t.shape[0], w2t.shape[0]
    z1 = jnp.zeros((d1, Hh), jnp.float32)
    z2 = jnp.zeros((d2, Hh), jnp.float32)
    c1 = lambda k: w1t[:, k * Hh:(k + 1) * Hh]
    c2 = lambda k: w2t[:, k * Hh:(k + 1) * Hh]
    # PyTorch gate order within each LSTM: 0=i, 1=f, 2=g, 3=o
    top = jnp.concatenate([c1(0), z1, c1(1), z1, c1(3), z1, c1(2), z1], axis=1)
    bot = jnp.concatenate([z2, c2(0), z2, c2(1), z2, c2(3), z2, c2(2)], axis=1)
    return jnp.concatenate([top, bot], axis=0)


def _fuse_gate_bias(b1, b2):
    Hh = LSTM_H
    s1 = lambda k: b1[k * Hh:(k + 1) * Hh]
    s2 = lambda k: b2[k * Hh:(k + 1) * Hh]
    return jnp.concatenate([s1(0), s2(0), s1(1), s2(1), s1(3), s2(3), s1(2), s2(2)])


def _pad_row(v):
    return jnp.pad(v.astype(jnp.float32), (0, VEC_W - v.shape[0]))


def prepare_operands(p):
    """One-time host-side precompute of the packed kernel weights (zero kernel cost)."""
    w_in = _fuse_gate_block_diag(p['wih1'].T, p['wih2'].T)            # (2*FEAT, G)
    w_hh = _fuse_gate_block_diag(p['whh1'].T, p['whh2'].T)            # (H2, G)
    fc_w = p['fcw'].T.astype(jnp.float32)                             # (H2, EMB_DIM)
    w_rec = jnp.concatenate([w_hh, fc_w], axis=1)                     # (H2, G + EMB_DIM)
    embT = p['emb_e'].T.astype(jnp.float32)                           # (EMB_DIM, NUM_ENTITIES)
    # fold fc weight into the entity-scoring matmul; bf16 MXU operand (v6e/v7x native)
    w_score = (fc_w @ embT).astype(jnp.bfloat16)                      # (H2, NUM_ENTITIES)
    gate_bias = _fuse_gate_bias(p['bih1'] + p['bhh1'],
                                p['bih2'] + p['bhh2'])                # (G,)
    out_bias = p['fcb'] @ embT + p['b']                               # (NUM_ENTITIES,)
    ent_colsum = jnp.sum(p['emb_e'], axis=1)                          # (NUM_ENTITIES,)
    vecs = jnp.stack([_pad_row(gate_bias), _pad_row(out_bias),
                      _pad_row(ent_colsum), _pad_row(p['fcb'])])      # (4, VEC_W)
    return dict(w_in=w_in.astype(jnp.float32),
                w_rec=w_rec.astype(jnp.float32),
                w_score=w_score,
                vecs=vecs)


# ------------------------------ wrapper -----------------------------------------
def dual_lstm_forward(e1, rel, p, packed):
    # embedding lookup + reshape (glue, outside the kernel)
    x1 = p['emb_e'][e1].reshape(BATCH, TIMESTEPS, FEAT)
    x2 = p['emb_rel'][rel].reshape(BATCH, TIMESTEPS, FEAT)
    # (B,T,2F) -> (T,B,2F) -> (T*B, 2F): timestep t is a contiguous 8-row slab
    x_cat = (jnp.concatenate([x1, x2], axis=-1)
             .transpose(1, 0, 2)
             .reshape(TIMESTEPS * BATCH, 2 * FEAT)
             .astype(jnp.float32))

    operands = (x_cat, packed['w_in'], packed['w_rec'],
                packed['w_score'], packed['vecs'])
    vmem = pl.BlockSpec(memory_space=pltpu.MemorySpace.VMEM)
    return pl.pallas_call(
        dual_lstm_kernel,
        out_shape=jax.ShapeDtypeStruct((BATCH, NUM_ENTITIES), jnp.float32),
        in_specs=[vmem] * len(operands),
        out_specs=vmem,
    )(*operands)


# ------------------------- init & pure-JAX reference ----------------------------
def init_params(key):
    ks = jax.random.split(key, 12)

    def u(k, shape, scale):
        return jax.random.uniform(k, shape, jnp.float32, -scale, scale)

    s = 1.0 / jnp.sqrt(LSTM_H)
    emb_e = jax.random.normal(ks[0], (NUM_ENTITIES, EMB_DIM), jnp.float32) * 0.1
    emb_e = emb_e.at[0].set(0.0)       # padding_idx=0
    emb_rel = jax.random.normal(ks[1], (NUM_RELATIONS, EMB_DIM), jnp.float32) * 0.1
    emb_rel = emb_rel.at[0].set(0.0)   # padding_idx=0
    return dict(
        emb_e=emb_e, emb_rel=emb_rel,
        wih1=u(ks[2], (4 * LSTM_H, FEAT), s), whh1=u(ks[3], (4 * LSTM_H, LSTM_H), s),
        bih1=u(ks[4], (4 * LSTM_H,), s),      bhh1=u(ks[5], (4 * LSTM_H,), s),
        wih2=u(ks[6], (4 * LSTM_H, FEAT), s), whh2=u(ks[7], (4 * LSTM_H, LSTM_H), s),
        bih2=u(ks[8], (4 * LSTM_H,), s),      bhh2=u(ks[9], (4 * LSTM_H,), s),
        fcw=u(ks[10], (EMB_DIM, HIDDEN_SIZE), 1.0 / jnp.sqrt(HIDDEN_SIZE)),
        fcb=u(ks[11], (EMB_DIM,), 1.0 / jnp.sqrt(HIDDEN_SIZE)),
        b=jnp.zeros((NUM_ENTITIES,), jnp.float32),
    )


def dual_lstm_reference(e1, rel, p):
    # pure-JAX reference of the original (unfused, un-rewritten) math
    def lstm(x, wih, whh, b):
        h = jnp.zeros((BATCH, LSTM_H), jnp.float32)
        c = jnp.zeros((BATCH, LSTM_H), jnp.float32)
        for t in range(TIMESTEPS):
            g = x[:, t, :] @ wih.T + h @ whh.T + b
            i, f, gg, o = (jax.nn.sigmoid(g[:, :LSTM_H]),
                           jax.nn.sigmoid(g[:, LSTM_H:2 * LSTM_H]),
                           jnp.tanh(g[:, 2 * LSTM_H:3 * LSTM_H]),
                           jax.nn.sigmoid(g[:, 3 * LSTM_H:]))
            c = f * c + i * gg
            h = o * jnp.tanh(c)
        return h

    x1 = p['emb_e'][e1].reshape(BATCH, TIMESTEPS, FEAT)
    x2 = p['emb_rel'][rel].reshape(BATCH, TIMESTEPS, FEAT)
    h1 = lstm(x1, p['wih1'], p['whh1'], p['bih1'] + p['bhh1'])
    h2 = lstm(x2, p['wih2'], p['whh2'], p['bih2'] + p['bhh2'])
    x = jnp.concatenate([h1, h2], axis=1) @ p['fcw'].T + p['fcb']
    x = jax.nn.log_softmax(x, axis=1)
    return jax.nn.sigmoid(x @ p['emb_e'].T + p['b'][None, :])


if __name__ == "__main__":
    key = jax.random.PRNGKey(0)
    kp, ke, kr = jax.random.split(key, 3)
    params = init_params(kp)
    packed = prepare_operands(params)          # one-time host-side precompute

    e1 = jax.random.randint(ke, (BATCH,), 0, NUM_ENTITIES)
    rel = jax.random.randint(kr, (BATCH,), 0, NUM_RELATIONS)

    pred = jax.block_until_ready(dual_lstm_forward(e1, rel, params, packed))
    ref = jax.block_until_ready(dual_lstm_reference(e1, rel, params))

    assert pred.shape == (BATCH, NUM_ENTITIES)
    assert jnp.allclose(pred, ref, rtol=1e-2, atol=1e-2), "mismatch vs JAX reference"
    print("KERNEL_OK")
</pallas_src>

<mosaic_0001>
module attributes {stable_mosaic.version = 11 : i64} {
  func.func @dual_lstm_kernel(%arg0: memref<64x32xf32, #tpu.memory_space<vmem>>, %arg1: memref<32x256xf32, #tpu.memory_space<vmem>>, %arg2: memref<64x384xf32, #tpu.memory_space<vmem>>, %arg3: memref<64x256xbf16, #tpu.memory_space<vmem>>, %arg4: memref<4x256xf32, #tpu.memory_space<vmem>>, %arg5: memref<8x256xf32, #tpu.memory_space<vmem>>) attributes {dimension_semantics = [], scalar_prefetch = 0 : i64, scratch_operands = 0 : i64, tpu.core_type = #tpu.core_type<tc>} {
    %c0 = arith.constant 0 : index
    %c0_0 = arith.constant 0 : index
    %0 = vector.load %arg4[%c0, %c0_0] : memref<4x256xf32, #tpu.memory_space<vmem>>, vector<4x256xf32>
    %1 = vector.extract_strided_slice %0 {offsets = [0, 0], sizes = [1, 256], strides = [1, 1]} : vector<4x256xf32> to vector<1x256xf32>
    %2 = vector.extract_strided_slice %0 {offsets = [1, 0], sizes = [1, 256], strides = [1, 1]} : vector<4x256xf32> to vector<1x256xf32>
    %3 = vector.extract_strided_slice %0 {offsets = [2, 0], sizes = [1, 256], strides = [1, 1]} : vector<4x256xf32> to vector<1x256xf32>
    %4 = vector.extract_strided_slice %0 {offsets = [3, 0], sizes = [1, 128], strides = [1, 1]} : vector<4x256xf32> to vector<1x128xf32>
    %c0_1 = arith.constant 0 : index
    %c0_2 = arith.constant 0 : index
    %5 = vector.load %arg0[%c0_1, %c0_2] : memref<64x32xf32, #tpu.memory_space<vmem>>, vector<64x32xf32>
    %c0_3 = arith.constant 0 : index
    %c0_4 = arith.constant 0 : index
    %6 = vector.load %arg1[%c0_3, %c0_4] : memref<32x256xf32, #tpu.memory_space<vmem>>, vector<32x256xf32>
    %cst = arith.constant dense<0.000000e+00> : vector<64x256xf32>
    %7 = tpu.matmul %5, %6, %cst {dimension_numbers = #tpu.dot_dimension_numbers<[1], [0], [0], [1], [0, 0, 1, 1], [], []>} : vector<64x32xf32>, vector<32x256xf32>, vector<64x256xf32> -> vector<64x256xf32>
    %8 = vector.broadcast %1 : vector<1x256xf32> to vector<64x256xf32>
    %9 = arith.addf %7, %8 : vector<64x256xf32>
    %c0_5 = arith.constant 0 : index
    %c0_6 = arith.constant 0 : index
    %10 = vector.load %arg2[%c0_5, %c0_6] : memref<64x384xf32, #tpu.memory_space<vmem>>, vector<64x256xf32>
    %c0_7 = arith.constant 0 : index
    %c256 = arith.constant 256 : index
    %11 = vector.load %arg2[%c0_7, %c256] : memref<64x384xf32, #tpu.memory_space<vmem>>, vector<64x128xf32>
    %cst_8 = arith.constant 0.000000e+00 : f32
    %12 = vector.broadcast %cst_8 : f32 to vector<8x64xf32>
    %cst_9 = arith.constant 0.000000e+00 : f32
    %13 = vector.broadcast %cst_9 : f32 to vector<8x64xf32>
    %cst_10 = arith.constant dense<0.000000e+00> : vector<8x256xf32>
    %14 = tpu.matmul %12, %10, %cst_10 {dimension_numbers = #tpu.dot_dimension_numbers<[1], [0], [0], [1], [0, 0, 1, 1], [], []>} : vector<8x64xf32>, vector<64x256xf32>, vector<8x256xf32> -> vector<8x256xf32>
    %15 = vector.extract_strided_slice %9 {offsets = [0, 0], sizes = [8, 256], strides = [1, 1]} : vector<64x256xf32> to vector<8x256xf32>
    %16 = arith.addf %14, %15 : vector<8x256xf32>
    %17 = vector.extract_strided_slice %16 {offsets = [0, 0], sizes = [8, 192], strides = [1, 1]} : vector<8x256xf32> to vector<8x192xf32>
    %18 = arith.negf %17 : vector<8x192xf32>
    %19 = math.exp %18 : vector<8x192xf32>
    %cst_11 = arith.constant 1.000000e+00 : f32
    %20 = vector.broadcast %cst_11 : f32 to vector<8x192xf32>
    %21 = arith.addf %20, %19 : vector<8x192xf32>
    %22 = arith.divf %20, %21 : vector<8x192xf32>
    %23 = vector.extract_strided_slice %16 {offsets = [0, 192], sizes = [8, 64], strides = [1, 1]} : vector<8x256xf32> to vector<8x64xf32>
    %24 = math.tanh %23 : vector<8x64xf32>
    %25 = vector.extract_strided_slice %22 {offsets = [0, 0], sizes = [8, 64], strides = [1, 1]} : vector<8x192xf32> to vector<8x64xf32>
    %26 = vector.extract_strided_slice %22 {offsets = [0, 64], sizes = [8, 64], strides = [1, 1]} : vector<8x192xf32> to vector<8x64xf32>
    %27 = vector.extract_strided_slice %22 {offsets = [0, 128], sizes = [8, 64], strides = [1, 1]} : vector<8x192xf32> to vector<8x64xf32>
    %28 = arith.mulf %26, %13 : vector<8x64xf32>
    %29 = arith.mulf %25, %24 : vector<8x64xf32>
    %30 = arith.addf %28, %29 : vector<8x64xf32>
    %31 = math.tanh %30 : vector<8x64xf32>
    %32 = arith.mulf %27, %31 : vector<8x64xf32>
    %cst_12 = arith.constant dense<0.000000e+00> : vector<8x256xf32>
    %33 = tpu.matmul %32, %10, %cst_12 {dimension_numbers = #tpu.dot_dimension_numbers<[1], [0], [0], [1], [0, 0, 1, 1], [], []>} : vector<8x64xf32>, vector<64x256xf32>, vector<8x256xf32> -> vector<8x256xf32>
    %34 = vector.extract_strided_slice %9 {offsets = [8, 0], sizes = [8, 256], strides = [1, 1]} : vector<64x256xf32> to vector<8x256xf32>
    %35 = arith.addf %33, %34 : vector<8x256xf32>
    %36 = vector.extract_strided_slice %35 {offsets = [0, 0], sizes = [8, 192], strides = [1, 1]} : vector<8x256xf32> to vector<8x192xf32>
    %37 = arith.negf %36 : vector<8x192xf32>
    %38 = math.exp %37 : vector<8x192xf32>
    %cst_13 = arith.constant 1.000000e+00 : f32
    %39 = vector.broadcast %cst_13 : f32 to vector<8x192xf32>
    %40 = arith.addf %39, %38 : vector<8x192xf32>
    %41 = arith.divf %39, %40 : vector<8x192xf32>
    %42 = vector.extract_strided_slice %35 {offsets = [0, 192], sizes = [8, 64], strides = [1, 1]} : vector<8x256xf32> to vector<8x64xf32>
    %43 = math.tanh %42 : vector<8x64xf32>
    %44 = vector.extract_strided_slice %41 {offsets = [0, 0], sizes = [8, 64], strides = [1, 1]} : vector<8x192xf32> to vector<8x64xf32>
    %45 = vector.extract_strided_slice %41 {offsets = [0, 64], sizes = [8, 64], strides = [1, 1]} : vector<8x192xf32> to vector<8x64xf32>
    %46 = vector.extract_strided_slice %41 {offsets = [0, 128], sizes = [8, 64], strides = [1, 1]} : vector<8x192xf32> to vector<8x64xf32>
    %47 = arith.mulf %45, %30 : vector<8x64xf32>
    %48 = arith.mulf %44, %43 : vector<8x64xf32>
    %49 = arith.addf %47, %48 : vector<8x64xf32>
    %50 = math.tanh %49 : vector<8x64xf32>
    %51 = arith.mulf %46, %50 : vector<8x64xf32>
    %cst_14 = arith.constant dense<0.000000e+00> : vector<8x256xf32>
    %52 = tpu.matmul %51, %10, %cst_14 {dimension_numbers = #tpu.dot_dimension_numbers<[1], [0], [0], [1], [0, 0, 1, 1], [], []>} : vector<8x64xf32>, vector<64x256xf32>, vector<8x256xf32> -> vector<8x256xf32>
    %53 = vector.extract_strided_slice %9 {offsets = [16, 0], sizes = [8, 256], strides = [1, 1]} : vector<64x256xf32> to vector<8x256xf32>
    %54 = arith.addf %52, %53 : vector<8x256xf32>
    %55 = vector.extract_strided_slice %54 {offsets = [0, 0], sizes = [8, 192], strides = [1, 1]} : vector<8x256xf32> to vector<8x192xf32>
    %56 = arith.negf %55 : vector<8x192xf32>
    %57 = math.exp %56 : vector<8x192xf32>
    %cst_15 = arith.constant 1.000000e+00 : f32
    %58 = vector.broadcast %cst_15 : f32 to vector<8x192xf32>
    %59 = arith.addf %58, %57 : vector<8x192xf32>
    %60 = arith.divf %58, %59 : vector<8x192xf32>
    %61 = vector.extract_strided_slice %54 {offsets = [0, 192], sizes = [8, 64], strides = [1, 1]} : vector<8x256xf32> to vector<8x64xf32>
    %62 = math.tanh %61 : vector<8x64xf32>
    %63 = vector.extract_strided_slice %60 {offsets = [0, 0], sizes = [8, 64], strides = [1, 1]} : vector<8x192xf32> to vector<8x64xf32>
    %64 = vector.extract_strided_slice %60 {offsets = [0, 64], sizes = [8, 64], strides = [1, 1]} : vector<8x192xf32> to vector<8x64xf32>
    %65 = vector.extract_strided_slice %60 {offsets = [0, 128], sizes = [8, 64], strides = [1, 1]} : vector<8x192xf32> to vector<8x64xf32>
    %66 = arith.mulf %64, %49 : vector<8x64xf32>
    %67 = arith.mulf %63, %62 : vector<8x64xf32>
    %68 = arith.addf %66, %67 : vector<8x64xf32>
    %69 = math.tanh %68 : vector<8x64xf32>
    %70 = arith.mulf %65, %69 : vector<8x64xf32>
    %cst_16 = arith.constant dense<0.000000e+00> : vector<8x256xf32>
    %71 = tpu.matmul %70, %10, %cst_16 {dimension_numbers = #tpu.dot_dimension_numbers<[1], [0], [0], [1], [0, 0, 1, 1], [], []>} : vector<8x64xf32>, vector<64x256xf32>, vector<8x256xf32> -> vector<8x256xf32>
    %72 = vector.extract_strided_slice %9 {offsets = [24, 0], sizes = [8, 256], strides = [1, 1]} : vector<64x256xf32> to vector<8x256xf32>
    %73 = arith.addf %71, %72 : vector<8x256xf32>
    %74 = vector.extract_strided_slice %73 {offsets = [0, 0], sizes = [8, 192], strides = [1, 1]} : vector<8x256xf32> to vector<8x192xf32>
    %75 = arith.negf %74 : vector<8x192xf32>
    %76 = math.exp %75 : vector<8x192xf32>
    %cst_17 = arith.constant 1.000000e+00 : f32
    %77 = vector.broadcast %cst_17 : f32 to vector<8x192xf32>
    %78 = arith.addf %77, %76 : vector<8x192xf32>
    %79 = arith.divf %77, %78 : vector<8x192xf32>
    %80 = vector.extract_strided_slice %73 {offsets = [0, 192], sizes = [8, 64], strides = [1, 1]} : vector<8x256xf32> to vector<8x64xf32>
    %81 = math.tanh %80 : vector<8x64xf32>
    %82 = vector.extract_strided_slice %79 {offsets = [0, 0], sizes = [8, 64], strides = [1, 1]} : vector<8x192xf32> to vector<8x64xf32>
    %83 = vector.extract_strided_slice %79 {offsets = [0, 64], sizes = [8, 64], strides = [1, 1]} : vector<8x192xf32> to vector<8x64xf32>
    %84 = vector.extract_strided_slice %79 {offsets = [0, 128], sizes = [8, 64], strides = [1, 1]} : vector<8x192xf32> to vector<8x64xf32>
    %85 = arith.mulf %83, %68 : vector<8x64xf32>
    %86 = arith.mulf %82, %81 : vector<8x64xf32>
    %87 = arith.addf %85, %86 : vector<8x64xf32>
    %88 = math.tanh %87 : vector<8x64xf32>
    %89 = arith.mulf %84, %88 : vector<8x64xf32>
    %cst_18 = arith.constant dense<0.000000e+00> : vector<8x256xf32>
    %90 = tpu.matmul %89, %10, %cst_18 {dimension_numbers = #tpu.dot_dimension_numbers<[1], [0], [0], [1], [0, 0, 1, 1], [], []>} : vector<8x64xf32>, vector<64x256xf32>, vector<8x256xf32> -> vector<8x256xf32>
    %91 = vector.extract_strided_slice %9 {offsets = [32, 0], sizes = [8, 256], strides = [1, 1]} : vector<64x256xf32> to vector<8x256xf32>
    %92 = arith.addf %90, %91 : vector<8x256xf32>
    %93 = vector.extract_strided_slice %92 {offsets = [0, 0], sizes = [8, 192], strides = [1, 1]} : vector<8x256xf32> to vector<8x192xf32>
    %94 = arith.negf %93 : vector<8x192xf32>
    %95 = math.exp %94 : vector<8x192xf32>
    %cst_19 = arith.constant 1.000000e+00 : f32
    %96 = vector.broadcast %cst_19 : f32 to vector<8x192xf32>
    %97 = arith.addf %96, %95 : vector<8x192xf32>
    %98 = arith.divf %96, %97 : vector<8x192xf32>
    %99 = vector.extract_strided_slice %92 {offsets = [0, 192], sizes = [8, 64], strides = [1, 1]} : vector<8x256xf32> to vector<8x64xf32>
    %100 = math.tanh %99 : vector<8x64xf32>
    %101 = vector.extract_strided_slice %98 {offsets = [0, 0], sizes = [8, 64], strides = [1, 1]} : vector<8x192xf32> to vector<8x64xf32>
    %102 = vector.extract_strided_slice %98 {offsets = [0, 64], sizes = [8, 64], strides = [1, 1]} : vector<8x192xf32> to vector<8x64xf32>
    %103 = vector.extract_strided_slice %98 {offsets = [0, 128], sizes = [8, 64], strides = [1, 1]} : vector<8x192xf32> to vector<8x64xf32>
    %104 = arith.mulf %102, %87 : vector<8x64xf32>
    %105 = arith.mulf %101, %100 : vector<8x64xf32>
    %106 = arith.addf %104, %105 : vector<8x64xf32>
    %107 = math.tanh %106 : vector<8x64xf32>
    %108 = arith.mulf %103, %107 : vector<8x64xf32>
    %cst_20 = arith.constant dense<0.000000e+00> : vector<8x256xf32>
    %109 = tpu.matmul %108, %10, %cst_20 {dimension_numbers = #tpu.dot_dimension_numbers<[1], [0], [0], [1], [0, 0, 1, 1], [], []>} : vector<8x64xf32>, vector<64x256xf32>, vector<8x256xf32> -> vector<8x256xf32>
    %110 = vector.extract_strided_slice %9 {offsets = [40, 0], sizes = [8, 256], strides = [1, 1]} : vector<64x256xf32> to vector<8x256xf32>
    %111 = arith.addf %109, %110 : vector<8x256xf32>
    %112 = vector.extract_strided_slice %111 {offsets = [0, 0], sizes = [8, 192], strides = [1, 1]} : vector<8x256xf32> to vector<8x192xf32>
    %113 = arith.negf %112 : vector<8x192xf32>
    %114 = math.exp %113 : vector<8x192xf32>
    %cst_21 = arith.constant 1.000000e+00 : f32
    %115 = vector.broadcast %cst_21 : f32 to vector<8x192xf32>
    %116 = arith.addf %115, %114 : vector<8x192xf32>
    %117 = arith.divf %115, %116 : vector<8x192xf32>
    %118 = vector.extract_strided_slice %111 {offsets = [0, 192], sizes = [8, 64], strides = [1, 1]} : vector<8x256xf32> to vector<8x64xf32>
    %119 = math.tanh %118 : vector<8x64xf32>
    %120 = vector.extract_strided_slice %117 {offsets = [0, 0], sizes = [8, 64], strides = [1, 1]} : vector<8x192xf32> to vector<8x64xf32>
    %121 = vector.extract_strided_slice %117 {offsets = [0, 64], sizes = [8, 64], strides = [1, 1]} : vector<8x192xf32> to vector<8x64xf32>
    %122 = vector.extract_strided_slice %117 {offsets = [0, 128], sizes = [8, 64], strides = [1, 1]} : vector<8x192xf32> to vector<8x64xf32>
    %123 = arith.mulf %121, %106 : vector<8x64xf32>
    %124 = arith.mulf %120, %119 : vector<8x64xf32>
    %125 = arith.addf %123, %124 : vector<8x64xf32>
    %126 = math.tanh %125 : vector<8x64xf32>
    %127 = arith.mulf %122, %126 : vector<8x64xf32>
    %cst_22 = arith.constant dense<0.000000e+00> : vector<8x256xf32>
    %128 = tpu.matmul %127, %10, %cst_22 {dimension_numbers = #tpu.dot_dimension_numbers<[1], [0], [0], [1], [0, 0, 1, 1], [], []>} : vector<8x64xf32>, vector<64x256xf32>, vector<8x256xf32> -> vector<8x256xf32>
    %129 = vector.extract_strided_slice %9 {offsets = [48, 0], sizes = [8, 256], strides = [1, 1]} : vector<64x256xf32> to vector<8x256xf32>
    %130 = arith.addf %128, %129 : vector<8x256xf32>
    %131 = vector.extract_strided_slice %130 {offsets = [0, 0], sizes = [8, 192], strides = [1, 1]} : vector<8x256xf32> to vector<8x192xf32>
    %132 = arith.negf %131 : vector<8x192xf32>
    %133 = math.exp %132 : vector<8x192xf32>
    %cst_23 = arith.constant 1.000000e+00 : f32
    %134 = vector.broadcast %cst_23 : f32 to vector<8x192xf32>
    %135 = arith.addf %134, %133 : vector<8x192xf32>
    %136 = arith.divf %134, %135 : vector<8x192xf32>
    %137 = vector.extract_strided_slice %130 {offsets = [0, 192], sizes = [8, 64], strides = [1, 1]} : vector<8x256xf32> to vector<8x64xf32>
    %138 = math.tanh %137 : vector<8x64xf32>
    %139 = vector.extract_strided_slice %136 {offsets = [0, 0], sizes = [8, 64], strides = [1, 1]} : vector<8x192xf32> to vector<8x64xf32>
    %140 = vector.extract_strided_slice %136 {offsets = [0, 64], sizes = [8, 64], strides = [1, 1]} : vector<8x192xf32> to vector<8x64xf32>
    %141 = vector.extract_strided_slice %136 {offsets = [0, 128], sizes = [8, 64], strides = [1, 1]} : vector<8x192xf32> to vector<8x64xf32>
    %142 = arith.mulf %140, %125 : vector<8x64xf32>
    %143 = arith.mulf %139, %138 : vector<8x64xf32>
    %144 = arith.addf %142, %143 : vector<8x64xf32>
    %145 = math.tanh %144 : vector<8x64xf32>
    %146 = arith.mulf %141, %145 : vector<8x64xf32>
    %cst_24 = arith.constant dense<0.000000e+00> : vector<8x256xf32>
    %147 = tpu.matmul %146, %10, %cst_24 {dimension_numbers = #tpu.dot_dimension_numbers<[1], [0], [0], [1], [0, 0, 1, 1], [], []>} : vector<8x64xf32>, vector<64x256xf32>, vector<8x256xf32> -> vector<8x256xf32>
    %148 = vector.extract_strided_slice %9 {offsets = [56, 0], sizes = [8, 256], strides = [1, 1]} : vector<64x256xf32> to vector<8x256xf32>
    %149 = arith.addf %147, %148 : vector<8x256xf32>
    %150 = vector.extract_strided_slice %149 {offsets = [0, 0], sizes = [8, 192], strides = [1, 1]} : vector<8x256xf32> to vector<8x192xf32>
    %151 = arith.negf %150 : vector<8x192xf32>
    %152 = math.exp %151 : vector<8x192xf32>
    %cst_25 = arith.constant 1.000000e+00 : f32
    %153 = vector.broadcast %cst_25 : f32 to vector<8x192xf32>
    %154 = arith.addf %153, %152 : vector<8x192xf32>
    %155 = arith.divf %153, %154 : vector<8x192xf32>
    %156 = vector.extract_strided_slice %149 {offsets = [0, 192], sizes = [8, 64], strides = [1, 1]} : vector<8x256xf32> to vector<8x64xf32>
    %157 = math.tanh %156 : vector<8x64xf32>
    %158 = vector.extract_strided_slice %155 {offsets = [0, 0], sizes = [8, 64], strides = [1, 1]} : vector<8x192xf32> to vector<8x64xf32>
    %159 = vector.extract_strided_slice %155 {offsets = [0, 64], sizes = [8, 64], strides = [1, 1]} : vector<8x192xf32> to vector<8x64xf32>
    %160 = vector.extract_strided_slice %155 {offsets = [0, 128], sizes = [8, 64], strides = [1, 1]} : vector<8x192xf32> to vector<8x64xf32>
    %161 = arith.mulf %159, %144 : vector<8x64xf32>
    %162 = arith.mulf %158, %157 : vector<8x64xf32>
    %163 = arith.addf %161, %162 : vector<8x64xf32>
    %164 = math.tanh %163 : vector<8x64xf32>
    %165 = arith.mulf %160, %164 : vector<8x64xf32>
    %cst_26 = arith.constant dense<0.000000e+00> : vector<8x128xf32>
    %166 = tpu.matmul %165, %11, %cst_26 {dimension_numbers = #tpu.dot_dimension_numbers<[1], [0], [0], [1], [0, 0, 1, 1], [], []>} : vector<8x64xf32>, vector<64x128xf32>, vector<8x128xf32> -> vector<8x128xf32>
    %167 = vector.broadcast %4 : vector<1x128xf32> to vector<8x128xf32>
    %168 = arith.addf %166, %167 : vector<8x128xf32>
    %cst_27 = arith.constant dense<0xFF800000> : vector<8xf32>
    %169 = vector.multi_reduction <maximumf>, %168, %cst_27 [1] : vector<8x128xf32> to vector<8xf32>
    %170 = vector.shape_cast %169 : vector<8xf32> to vector<8x1xf32>
    %171 = vector.broadcast %170 : vector<8x1xf32> to vector<8x128xf32>
    %172 = arith.subf %168, %171 : vector<8x128xf32>
    %173 = math.exp %172 : vector<8x128xf32>
    %cst_28 = arith.constant dense<0.000000e+00> : vector<8xf32>
    %174 = vector.multi_reduction <add>, %173, %cst_28 [1] : vector<8x128xf32> to vector<8xf32>
    %175 = vector.shape_cast %174 : vector<8xf32> to vector<8x1xf32>
    %176 = math.log %175 : vector<8x1xf32>
    %177 = arith.addf %176, %170 : vector<8x1xf32>
    %178 = arith.truncf %165 : vector<8x64xf32> to vector<8x64xbf16>
    %c0_29 = arith.constant 0 : index
    %c0_30 = arith.constant 0 : index
    %179 = vector.load %arg3[%c0_29, %c0_30] : memref<64x256xbf16, #tpu.memory_space<vmem>>, vector<64x256xbf16>
    %cst_31 = arith.constant dense<0.000000e+00> : vector<8x256xf32>
    %180 = tpu.matmul %178, %179, %cst_31 {dimension_numbers = #tpu.dot_dimension_numbers<[1], [0], [0], [1], [0, 0, 1, 1], [], []>} : vector<8x64xbf16>, vector<64x256xbf16>, vector<8x256xf32> -> vector<8x256xf32>
    %181 = vector.broadcast %2 : vector<1x256xf32> to vector<8x256xf32>
    %182 = arith.addf %180, %181 : vector<8x256xf32>
    %183 = vector.broadcast %177 : vector<8x1xf32> to vector<8x256xf32>
    %184 = vector.broadcast %3 : vector<1x256xf32> to vector<8x256xf32>
    %185 = arith.mulf %183, %184 : vector<8x256xf32>
    %186 = arith.subf %182, %185 : vector<8x256xf32>
    %187 = arith.negf %186 : vector<8x256xf32>
    %188 = math.exp %187 : vector<8x256xf32>
    %cst_32 = arith.constant 1.000000e+00 : f32
    %189 = vector.broadcast %cst_32 : f32 to vector<8x256xf32>
    %190 = arith.addf %189, %188 : vector<8x256xf32>
    %191 = arith.divf %189, %190 : vector<8x256xf32>
    %c0_33 = arith.constant 0 : index
    %c0_34 = arith.constant 0 : index
    %192 = vector.load %arg5[%c0_33, %c0_34] : memref<8x256xf32, #tpu.memory_space<vmem>>, vector<8x256xf32>
    tpu.vector_store %arg5[%c0_33, %c0_34], %191 {strides = array<i32>} : memref<8x256xf32, #tpu.memory_space<vmem>>, vector<8x256xf32>,
    return
  }
}

</mosaic_0001>

<llo_original>
// kernel: tpu_custom_call.1
$region0: #{tpu_custom_call.1}
  #allocation0 [shape = 'u32[]', space=smem, size = 0x4, offset = 0x4, fixed_abs, tag = 'smem constant byte address 0x4 - core index']
  #allocation1 [shape = 'u32[144,128]{1,0:T(1,128)}', space=vmem, size = 0x12000, scoped, tag = 'internal scratch']
  %s0 = inlined_call_operand.vmem [shape: f32[64,32], index: 0, kind: input, shape index: {}]
  %s1 = inlined_call_operand.vmem [shape: f32[32,256], index: 1, kind: input, shape index: {}]
  %s2 = inlined_call_operand.hbm [shape: f32[64,384], index: 2, kind: input, shape index: {}]
  %s3 = inlined_call_operand.hbm [shape: bf16[64,256], index: 3, kind: input, shape index: {}]
  %s4 = inlined_call_operand.vmem [shape: f32[4,256], index: 4, kind: input, shape index: {}]
  %s5 = inlined_call_operand.hbm [shape: f32[8,256], index: 5, kind: output, shape index: {}]
  %s6 = sld [smem:[#allocation0]]
  $region38: #{tpu_custom_call.1} parent=0
    _
  %s8 = ssub.s32 1, %s6
  %s9 = scalar_select 0, %s8, %s6
  $region1: #{tpu_custom_call.1} parent=0
    #allocation2 [shape = 'u8[98304]{0}', space=vmem, size = 0x18000, scoped, tag = 'input window, operand 2, single buffered']
    #allocation3 [shape = 's32[1]{0}', space=sflag, size = 0x4, scoped, tag = 'scoped memory for tpu_custom_call.1']
    #allocation4 [shape = 's32[1]{0}', space=sflag, size = 0x4, scoped, tag = 'scoped memory for tpu_custom_call.1']
    #allocation5 [shape = 'u8[32768]{0}', space=vmem, size = 0x8000, scoped, tag = 'input window, operand 3, single buffered']
    #allocation6 [shape = 's32[1]{0}', space=sflag, size = 0x4, scoped, tag = 'scoped memory for tpu_custom_call.1']
    #allocation7 [shape = 'u8[8192]{0}', space=vmem, size = 0x2000, scoped, tag = 'output window, operand 0, single buffered']
    %10 = vsyncpa [#allocation3], 0
    %11 = vsyncpa [#allocation6], 0
    %12 = vsyncpa [#allocation4], 0
    // Predicated region
    $region2: #{tpu_custom_call.1} parent=1 // pred_check
      _
    $region3: #{tpu_custom_call.1} parent=1 // pred_check_branch
      %14 = sbr.rel (0) target = $region5
    $region4: #{tpu_custom_call.1} parent=1 // pred_region
      _
    $region5: #{tpu_custom_call.1} parent=1 // pred_fallthru
      _
    // Predicated region
    $region6: #{tpu_custom_call.1} parent=1 // pred_check
      _
    $region7: #{tpu_custom_call.1} parent=1 // pred_check_branch
      %16 = sbr.rel (0) target = $region9
    $region8: #{tpu_custom_call.1} parent=1 // pred_region
      _
    $region9: #{tpu_custom_call.1} parent=1 // pred_fallthru
      _
    // Predicated region
    $region10: #{tpu_custom_call.1} parent=1 // pred_check
      _
    $region11: #{tpu_custom_call.1} parent=1 // pred_check_branch
      %18 = sbr.rel (0) target = $region13
    $region12: #{tpu_custom_call.1} parent=1 // pred_region
      %s20 = ssub.s32 3072, 3072
      %21 = vsyncadd [#allocation3], %s20
      %s22 = sshll.u32 [#allocation2], 4
      %s23 = int_to_ptr.vmem [resolvable:$true] %s22
      %28 = dma.hbm_to_vmem [thread:$0]  %s2, 3072, %s23, [#allocation3], 384, 384, 24
    $region13: #{tpu_custom_call.1} parent=1 // pred_fallthru
      _
    // Predicated region
    $region14: #{tpu_custom_call.1} parent=1 // pred_check
      _
    $region15: #{tpu_custom_call.1} parent=1 // pred_check_branch
      %30 = sbr.rel (0) target = $region17
    $region16: #{tpu_custom_call.1} parent=1 // pred_region
      %s32 = ssub.s32 1024, 1024
      %33 = vsyncadd [#allocation6], %s32
      %s34 = sshll.u32 [#allocation5], 4
      %s35 = int_to_ptr.vmem [resolvable:$true] %s34
      %40 = dma.hbm_to_vmem [thread:$0]  %s3, 1024, %s35, [#allocation6], 128, 128, 8
    $region17: #{tpu_custom_call.1} parent=1 // pred_fallthru
      _
    // Predicated region
    $region18: #{tpu_custom_call.1} parent=1 // pred_check
      _
    $region19: #{tpu_custom_call.1} parent=1 // pred_check_branch
      %42 = sbr.rel (0) target = $region21
    $region20: #{tpu_custom_call.1} parent=1 // pred_region
      _
    $region21: #{tpu_custom_call.1} parent=1 // pred_fallthru
      _
    // Predicated region
    $region22: #{tpu_custom_call.1} parent=1 // pred_check
      _
    $region23: #{tpu_custom_call.1} parent=1 // pred_check_branch
      %44 = sbr.rel (0) target = $region25
    $region24: #{tpu_custom_call.1} parent=1 // pred_region
      %45 = dma.done [#allocation3], 3072
    $region25: #{tpu_custom_call.1} parent=1 // pred_fallthru
      _
    // Predicated region
    $region26: #{tpu_custom_call.1} parent=1 // pred_check
      _
    $region27: #{tpu_custom_call.1} parent=1 // pred_check_branch
      %47 = sbr.rel (0) target = $region29
    $region28: #{tpu_custom_call.1} parent=1 // pred_region
      %48 = dma.done [#allocation6], 1024
    $region29: #{tpu_custom_call.1} parent=1 // pred_fallthru
      _
    %v50 = vld [vmem:[%s4] sm:$0xff]
    %v51 = vld [vmem:[%s0] sm:$0xff]
    %v52 = vld [vmem:[%s0 + $0x8] sm:$0xff]
    %v53 = vld [vmem:[%s0 + $0x10] sm:$0xff]
    %v54 = vld [vmem:[%s0 + $0x18] sm:$0xff]
    %v55 = vld [vmem:[%s0 + $0x20] sm:$0xff]
    %v56 = vld [vmem:[%s0 + $0x28] sm:$0xff]
    %v57 = vld [vmem:[%s0 + $0x30] sm:$0xff]
    %v58 = vld [vmem:[%s0 + $0x38] sm:$0xff]
    %v59 = vld [vmem:[%s1] sm:$0xff]
    %v60 = vld [vmem:[%s1 + $0x8] sm:$0xff]
    %v61 = vld [vmem:[%s1 + $0x10] sm:$0xff]
    %v62 = vld [vmem:[%s1 + $0x18] sm:$0xff]
    %v63 = vld [vmem:[%s1 + $0x20] sm:$0xff]
    %v64 = vld [vmem:[%s1 + $0x28] sm:$0xff]
    %v65 = vld [vmem:[%s1 + $0x30] sm:$0xff]
    %v66 = vld [vmem:[%s1 + $0x38] sm:$0xff]
    %v68 = vlaneseq
    %v69 = vshrl.u32 %v68, 7
    %v70 = vsub.s32 0, %v69
    %v71 = vrot.slane %v50, %v70
    %v72 = vlaneseq
    %v73 = vshrl.u32 %v72, 7
    %v74 = vsub.s32 4, %v73
    %v75 = vrot.slane %v50, %v74
    %v78 = vlaneseq
    %v79 = vshrl.u32 %v78, 7
    %v80 = vsub.s32 0, %v79
    %v81 = vrot.slane %v71, %v80
    %v82 = vlaneseq
    %v83 = vshrl.u32 %v82, 7
    %v84 = vsub.s32 0, %v83
    %v85 = vrot.slane %v75, %v84
    %vm86 = vcmask 261120
    %v88 = vsel %vm86, %v51, 0
    %v91 = vsel %vm86, %v52, 0
    %v94 = vsel %vm86, %v53, 0
    %v97 = vsel %vm86, %v54, 0
    %v100 = vsel %vm86, %v55, 0
    %v103 = vsel %vm86, %v56, 0
    %v106 = vsel %vm86, %v57, 0
    %v109 = vsel %vm86, %v58, 0
    %111 = vmatprep.subr.mxu0 %v60
    %112 = vmatpush1.msra.mxu0 %v59
    %113 = vmatprep.subr.mxu0 %v62
    %114 = vmatpush1.msra.mxu0 %v61
    %115 = vmatprep.subr.mxu0 %v64
    %116 = vmatpush1.msra.mxu0 %v63
    %117 = vmatprep.subr.mxu0 %v66
    %118 = vmatpush1.msra.mxu0 %v65
    %119 = vmatprep.subr.mxu0 0.0
    %120 = vmatpush1.msra.mxu0 0.0
    %121 = vmatprep.subr.mxu0 0.0
    %122 = vmatpush1.msra.mxu0 0.0
    %123 = vmatprep.subr.mxu0 0.0
    %124 = vmatpush1.msra.mxu0 0.0
    %125 = vmatprep.subr.mxu0 0.0
    %126 = vmatpush1.msra.mxu0 0.0
    %127 = vmatprep.subr.mxu0 0.0
    %128 = vmatpush1.msra.mxu0 0.0
    %129 = vmatprep.subr.mxu0 0.0
    %130 = vmatpush1.msra.mxu0 0.0
    %131 = vmatprep.subr.mxu0 0.0
    %132 = vmatpush1.msra.mxu0 0.0
    %133 = vmatprep.subr.mxu0 0.0
    %134 = vmatpush1.msra.mxu0 0.0
    %135 = vmatprep.subr.mxu0 0.0
    %136 = vmatpush1.msra.mxu0 0.0
    %137 = vmatprep.subr.mxu0 0.0
    %138 = vmatpush1.msra.mxu0 0.0
    %139 = vmatprep.subr.mxu0 0.0
    %140 = vmatpush1.msra.mxu0 0.0
    %141 = vmatprep.subr.mxu0 0.0
    %142 = vmatpush1.msra.mxu0 0.0
    %143 = vmatprep.subr.mxu0 0.0
    %144 = vmatpush1.msra.mxu0 0.0
    %145 = vmatprep.subr.mxu0 0.0
    %146 = vmatpush1.msra.mxu0 0.0
    %147 = vmatprep.subr.mxu0 0.0
    %148 = vmatpush1.msra.mxu0 0.0
    %149 = vmatprep.subr.mxu0 0.0
    %150 = vmatpush1.msra.mxu0 0.0
    %151 = vmatprep.subr.mxu0 0.0
    %152 = vmatpush1.msra.mxu0 0.0
    %153 = vmatprep.subr.mxu0 0.0
    %154 = vmatpush1.msra.mxu0 0.0
    %155 = vmatprep.subr.mxu0 0.0
    %156 = vmatpush1.msra.mxu0 0.0
    %157 = vmatprep.subr.mxu0 0.0
    %158 = vmatpush1.msra.mxu0 0.0
    %159 = vmatprep.subr.mxu0 0.0
    %160 = vmatpush1.msra.mxu0 0.0
    %161 = vmatprep.subr.mxu0 0.0
    %162 = vmatpush1.msra.mxu0 0.0
    %163 = vmatprep.subr.mxu0 0.0
    %164 = vmatpush1.msra.mxu0 0.0
    %165 = vmatprep.subr.mxu0 0.0
    %166 = vmatpush1.msra.mxu0 0.0
    %167 = vmatprep.subr.mxu0 0.0
    %168 = vmatpush1.msra.mxu0 0.0
    %169 = vmatprep.subr.mxu0 0.0
    %170 = vmatpush1.msra.mxu0 0.0
    %171 = vmatprep.subr.mxu0 0.0
    %172 = vmatpush1.msra.mxu0 0.0
    %173 = vmatprep.subr.mxu0 0.0
    %174 = vmatpush1.msra.mxu0 0.0
    %175 = vmatprep.mubr.f32.mxu0 0.0
    %176 = vmatmul.mubr.f32.gmra.mrb[0].mxu0 %v88
    %v177 = vpop.f32.mrb[0].mxu0
    %v178 = vadd.f32 %v81, %v177
    %v179 = vpop.f32.mrb[0].mxu0
    %v180 = vadd.f32 %v85, %v179
    %181 = vmatprep.mubr.f32.mxu0 0.0
    %182 = vmatmul.mubr.f32.gmra.mrb[0].mxu0 %v91
    %v183 = vpop.f32.mrb[0].mxu0
    %v184 = vadd.f32 %v81, %v183
    %v185 = vpop.f32.mrb[0].mxu0
    %v186 = vadd.f32 %v85, %v185
    %187 = vmatprep.mubr.f32.mxu0 0.0
    %188 = vmatmul.mubr.f32.gmra.mrb[0].mxu0 %v94
    %v189 = vpop.f32.mrb[0].mxu0
    %v190 = vadd.f32 %v81, %v189
    %v191 = vpop.f32.mrb[0].mxu0
    %v192 = vadd.f32 %v85, %v191
    %193 = vmatprep.mubr.f32.mxu0 0.0
    %194 = vmatmul.mubr.f32.gmra.mrb[0].mxu0 %v97
    %v195 = vpop.f32.mrb[0].mxu0
    %v196 = vadd.f32 %v81, %v195
    %v197 = vpop.f32.mrb[0].mxu0
    %v198 = vadd.f32 %v85, %v197
    %199 = vmatprep.mubr.f32.mxu0 0.0
    %200 = vmatmul.mubr.f32.gmra.mrb[0].mxu0 %v100
    %v201 = vpop.f32.mrb[0].mxu0
    %v202 = vadd.f32 %v81, %v201
    %v203 = vpop.f32.mrb[0].mxu0
    %v204 = vadd.f32 %v85, %v203
    %205 = vmatprep.mubr.f32.mxu0 0.0
    %206 = vmatmul.mubr.f32.gmra.mrb[0].mxu0 %v103
    %v207 = vpop.f32.mrb[0].mxu0
    %v208 = vadd.f32 %v81, %v207
    %v209 = vpop.f32.mrb[0].mxu0
    %v210 = vadd.f32 %v85, %v209
    %211 = vmatprep.mubr.f32.mxu0 0.0
    %212 = vmatmul.mubr.f32.gmra.mrb[0].mxu0 %v106
    %v213 = vpop.f32.mrb[0].mxu0
    %v214 = vadd.f32 %v81, %v213
    %v215 = vpop.f32.mrb[0].mxu0
    %v216 = vadd.f32 %v85, %v215
    %217 = vmatprep.mubr.f32.mxu0 0.0
    %218 = vmatmul.mubr.f32.gmra.mrb[0].mxu0 %v109
    %v219 = vpop.f32.mrb[0].mxu0
    %v220 = vadd.f32 %v81, %v219
    %v221 = vpop.f32.mrb[0].mxu0
    %v222 = vadd.f32 %v85, %v221
    %223 = vdwg.mxu0
    %v224 = vld [vmem:[#allocation2] sm:$0xff]
    %v225 = vld [vmem:[#allocation2 + $0x8] sm:$0xff]
    %v226 = vld [vmem:[#allocation2 + $0x18] sm:$0xff]
    %v227 = vld [vmem:[#allocation2 + $0x20] sm:$0xff]
    %v228 = vld [vmem:[#allocation2 + $0x30] sm:$0xff]
    %v229 = vld [vmem:[#allocation2 + $0x38] sm:$0xff]
    %v230 = vld [vmem:[#allocation2 + $0x48] sm:$0xff]
    %v231 = vld [vmem:[#allocation2 + $0x50] sm:$0xff]
    %v232 = vld [vmem:[#allocation2 + $0x60] sm:$0xff]
    %v233 = vld [vmem:[#allocation2 + $0x68] sm:$0xff]
    %v234 = vld [vmem:[#allocation2 + $0x78] sm:$0xff]
    %v235 = vld [vmem:[#allocation2 + $0x80] sm:$0xff]
    %v236 = vld [vmem:[#allocation2 + $0x90] sm:$0xff]
    %v237 = vld [vmem:[#allocation2 + $0x98] sm:$0xff]
    %v238 = vld [vmem:[#allocation2 + $0xa8] sm:$0xff]
    %v239 = vld [vmem:[#allocation2 + $0xb0] sm:$0xff]
    %v240 = vld [vmem:[#allocation2 + $0x10] sm:$0xff]
    %v241 = vld [vmem:[#allocation2 + $0x28] sm:$0xff]
    %v242 = vld [vmem:[#allocation2 + $0x40] sm:$0xff]
    %v243 = vld [vmem:[#allocation2 + $0x58] sm:$0xff]
    %v244 = vld [vmem:[#allocation2 + $0x70] sm:$0xff]
    %v245 = vld [vmem:[#allocation2 + $0x88] sm:$0xff]
    %v246 = vld [vmem:[#allocation2 + $0xa0] sm:$0xff]
    %v247 = vld [vmem:[#allocation2 + $0xb8] sm:$0xff]
    %vm248 = vcmask 523264
    %v250 = vsel %vm248, 0.0, 0
    %252 = vmatprep.subr.mxu0 %v225
    %253 = vmatpush1.msra.mxu0 %v224
    %254 = vmatprep.subr.mxu0 %v227
    %255 = vmatpush1.msra.mxu0 %v226
    %256 = vmatprep.subr.mxu0 %v229
    %257 = vmatpush1.msra.mxu0 %v228
    %258 = vmatprep.subr.mxu0 %v231
    %259 = vmatpush1.msra.mxu0 %v230
    %260 = vmatprep.subr.mxu0 %v233
    %261 = vmatpush1.msra.mxu0 %v232
    %262 = vmatprep.subr.mxu0 %v235
    %263 = vmatpush1.msra.mxu0 %v234
    %264 = vmatprep.subr.mxu0 %v237
    %265 = vmatpush1.msra.mxu0 %v236
    %266 = vmatprep.subr.mxu0 %v239
    %267 = vmatpush1.msra.mxu0 %v238
    %268 = vmatprep.subr.mxu0 0.0
    %269 = vmatpush1.msra.mxu0 0.0
    %270 = vmatprep.subr.mxu0 0.0
    %271 = vmatpush1.msra.mxu0 0.0
    %272 = vmatprep.subr.mxu0 0.0
    %273 = vmatpush1.msra.mxu0 0.0
    %274 = vmatprep.subr.mxu0 0.0
    %275 = vmatpush1.msra.mxu0 0.0
    %276 = vmatprep.subr.mxu0 0.0
    %277 = vmatpush1.msra.mxu0 0.0
    %278 = vmatprep.subr.mxu0 0.0
    %279 = vmatpush1.msra.mxu0 0.0
    %280 = vmatprep.subr.mxu0 0.0
    %281 = vmatpush1.msra.mxu0 0.0
    %282 = vmatprep.subr.mxu0 0.0
    %283 = vmatpush1.msra.mxu0 0.0
    %284 = vmatprep.subr.mxu0 0.0
    %285 = vmatpush1.msra.mxu0 0.0
    %286 = vmatprep.subr.mxu0 0.0
    %287 = vmatpush1.msra.mxu0 0.0
    %288 = vmatprep.subr.mxu0 0.0
    %289 = vmatpush1.msra.mxu0 0.0
    %290 = vmatprep.subr.mxu0 0.0
    %291 = vmatpush1.msra.mxu0 0.0
    %292 = vmatprep.subr.mxu0 0.0
    %293 = vmatpush1.msra.mxu0 0.0
    %294 = vmatprep.subr.mxu0 0.0
    %295 = vmatpush1.msra.mxu0 0.0
    %296 = vmatprep.subr.mxu0 0.0
    %297 = vmatpush1.msra.mxu0 0.0
    %298 = vmatprep.subr.mxu0 0.0
    %299 = vmatpush1.msra.mxu0 0.0
    %300 = vmatprep.subr.mxu0 0.0
    %301 = vmatpush1.msra.mxu0 0.0
    %302 = vmatprep.subr.mxu0 0.0
    %303 = vmatpush1.msra.mxu0 0.0
    %304 = vmatprep.subr.mxu0 0.0
    %305 = vmatpush1.msra.mxu0 0.0
    %306 = vmatprep.subr.mxu0 0.0
    %307 = vmatpush1.msra.mxu0 0.0
    %308 = vmatprep.subr.mxu0 0.0
    %309 = vmatpush1.msra.mxu0 0.0
    %310 = vmatprep.subr.mxu0 0.0
    %311 = vmatpush1.msra.mxu0 0.0
    %312 = vmatprep.subr.mxu0 0.0
    %313 = vmatpush1.msra.mxu0 0.0
    %314 = vmatprep.subr.mxu0 0.0
    %315 = vmatpush1.msra.mxu0 0.0
    %316 = vmatprep.mubr.f32.mxu0 0.0
    %317 = vmatmul.mubr.f32.gmra.mrb[0].mxu0 %v250
    %v318 = vpop.f32.mrb[0].mxu0
    %v319 = vadd.f32 %v178, %v318
    %v320 = vpop.f32.mrb[0].mxu0
    %v321 = vadd.f32 %v180, %v320
    %322 = vdwg.mxu0
    %v323 = vxor.u32 %v319, 2147483648
    %v324 = vxor.u32 %v321, 2147483648
    %v325 = vmul.f32 %v323, 1.442695
    %v326 = vpow.pop %v325
    %v327 = vmul.f32 %v324, 1.442695
    %v328 = vpow.pop %v327
    %v329 = vadd.f32 %v326, 1.0
    %v330 = vadd.f32 %v328, 1.0
    %v331 = vrcp.pop %v329
    %v332 = vmul.f32 1.0, %v331
    %v333 = vrcp.pop %v330
    %v334 = vmul.f32 1.0, %v333
    %v335 = vtanh.pop %v321
    %v336 = vmul.f32 %v332, 0.0
    %338 = vrot.lane.b32.xlu0 %v335, 64
    %v339 = vpop.permute.xlu0 %338
    %v341 = vmul.f32 %v332, %v339
    %343 = vrot.lane.b32.xlu0 %v341, 64
    %v344 = vpop.permute.xlu0 %343
    %v346 = vadd.f32 %v336, %v344
    %v347 = vtanh.pop %v346
    %349 = vrot.lane.b32.xlu0 %v347, 64
    %v350 = vpop.permute.xlu0 %349
    %v352 = vmul.f32 %v334, %v350
    %v354 = vsel %vm248, %v352, 0
    %356 = vmatprep.subr.mxu0 %v225
    %357 = vmatpush1.msra.mxu0 %v224
    %358 = vmatprep.subr.mxu0 %v227
    %359 = vmatpush1.msra.mxu0 %v226
    %360 = vmatprep.subr.mxu0 %v229
    %361 = vmatpush1.msra.mxu0 %v228
    %362 = vmatprep.subr.mxu0 %v231
    %363 = vmatpush1.msra.mxu0 %v230
    %364 = vmatprep.subr.mxu0 %v233
    %365 = vmatpush1.msra.mxu0 %v232
    %366 = vmatprep.subr.mxu0 %v235
    %367 = vmatpush1.msra.mxu0 %v234
    %368 = vmatprep.subr.mxu0 %v237
    %369 = vmatpush1.msra.mxu0 %v236
    %370 = vmatprep.subr.mxu0 %v239
    %371 = vmatpush1.msra.mxu0 %v238
    %372 = vmatprep.subr.mxu0 0.0
    %373 = vmatpush1.msra.mxu0 0.0
    %374 = vmatprep.subr.mxu0 0.0
    %375 = vmatpush1.msra.mxu0 0.0
    %376 = vmatprep.subr.mxu0 0.0
    %377 = vmatpush1.msra.mxu0 0.0
    %378 = vmatprep.subr.mxu0 0.0
    %379 = vmatpush1.msra.mxu0 0.0
    %380 = vmatprep.subr.mxu0 0.0
    %381 = vmatpush1.msra.mxu0 0.0
    %382 = vmatprep.subr.mxu0 0.0
    %383 = vmatpush1.msra.mxu0 0.0
    %384 = vmatprep.subr.mxu0 0.0
    %385 = vmatpush1.msra.mxu0 0.0
    %386 = vmatprep.subr.mxu0 0.0
    %387 = vmatpush1.msra.mxu0 0.0
    %388 = vmatprep.subr.mxu0 0.0
    %389 = vmatpush1.msra.mxu0 0.0
    %390 = vmatprep.subr.mxu0 0.0
    %391 = vmatpush1.msra.mxu0 0.0
    %392 = vmatprep.subr.mxu0 0.0
    %393 = vmatpush1.msra.mxu0 0.0
    %394 = vmatprep.subr.mxu0 0.0
    %395 = vmatpush1.msra.mxu0 0.0
    %396 = vmatprep.subr.mxu0 0.0
    %397 = vmatpush1.msra.mxu0 0.0
    %398 = vmatprep.subr.mxu0 0.0
    %399 = vmatpush1.msra.mxu0 0.0
    %400 = vmatprep.subr.mxu0 0.0
    %401 = vmatpush1.msra.mxu0 0.0
    %402 = vmatprep.subr.mxu0 0.0
    %403 = vmatpush1.msra.mxu0 0.0
    %404 = vmatprep.subr.mxu0 0.0
    %405 = vmatpush1.msra.mxu0 0.0
    %406 = vmatprep.subr.mxu0 0.0
    %407 = vmatpush1.msra.mxu0 0.0
    %408 = vmatprep.subr.mxu0 0.0
    %409 = vmatpush1.msra.mxu0 0.0
    %410 = vmatprep.subr.mxu0 0.0
    %411 = vmatpush1.msra.mxu0 0.0
    %412 = vmatprep.subr.mxu0 0.0
    %413 = vmatpush1.msra.mxu0 0.0
    %414 = vmatprep.subr.mxu0 0.0
    %415 = vmatpush1.msra.mxu0 0.0
    %416 = vmatprep.subr.mxu0 0.0
    %417 = vmatpush1.msra.mxu0 0.0
    %418 = vmatprep.subr.mxu0 0.0
    %419 = vmatpush1.msra.mxu0 0.0
    %420 = vmatprep.mubr.f32.mxu0 0.0
    %421 = vmatmul.mubr.f32.gmra.mrb[0].mxu0 %v354
    %v422 = vpop.f32.mrb[0].mxu0
    %v423 = vadd.f32 %v184, %v422
    %v424 = vpop.f32.mrb[0].mxu0
    %v425 = vadd.f32 %v186, %v424
    %426 = vdwg.mxu0
    %v427 = vxor.u32 %v423, 2147483648
    %v428 = vxor.u32 %v425, 2147483648
    %v429 = vmul.f32 %v427, 1.442695
    %v430 = vpow.pop %v429
    %v431 = vmul.f32 %v428, 1.442695
    %v432 = vpow.pop %v431
    %v433 = vadd.f32 %v430, 1.0
    %v434 = vadd.f32 %v432, 1.0
    %v435 = vrcp.pop %v433
    %v436 = vmul.f32 1.0, %v435
    %v437 = vrcp.pop %v434
    %v438 = vmul.f32 1.0, %v437
    %v439 = vtanh.pop %v425
    %v440 = vmul.f32 %v436, %v346
    %442 = vrot.lane.b32.xlu0 %v439, 64
    %v443 = vpop.permute.xlu0 %442
    %v445 = vmul.f32 %v436, %v443
    %447 = vrot.lane.b32.xlu0 %v445, 64
    %v448 = vpop.permute.xlu0 %447
    %v450 = vadd.f32 %v440, %v448
    %v451 = vtanh.pop %v450
    %453 = vrot.lane.b32.xlu0 %v451, 64
    %v454 = vpop.permute.xlu0 %453
    %v456 = vmul.f32 %v438, %v454
    %v458 = vsel %vm248, %v456, 0
    %460 = vmatprep.subr.mxu0 %v225
    %461 = vmatpush1.msra.mxu0 %v224
    %462 = vmatprep.subr.mxu0 %v227
    %463 = vmatpush1.msra.mxu0 %v226
    %464 = vmatprep.subr.mxu0 %v229
    %465 = vmatpush1.msra.mxu0 %v228
    %466 = vmatprep.subr.mxu0 %v231
    %467 = vmatpush1.msra.mxu0 %v230
    %468 = vmatprep.subr.mxu0 %v233
    %469 = vmatpush1.msra.mxu0 %v232
    %470 = vmatprep.subr.mxu0 %v235
    %471 = vmatpush1.msra.mxu0 %v234
    %472 = vmatprep.subr.mxu0 %v237
    %473 = vmatpush1.msra.mxu0 %v236
    %474 = vmatprep.subr.mxu0 %v239
    %475 = vmatpush1.msra.mxu0 %v238
    %476 = vmatprep.subr.mxu0 0.0
    %477 = vmatpush1.msra.mxu0 0.0
    %478 = vmatprep.subr.mxu0 0.0
    %479 = vmatpush1.msra.mxu0 0.0
    %480 = vmatprep.subr.mxu0 0.0
    %481 = vmatpush1.msra.mxu0 0.0
    %482 = vmatprep.subr.mxu0 0.0
    %483 = vmatpush1.msra.mxu0 0.0
    %484 = vmatprep.subr.mxu0 0.0
    %485 = vmatpush1.msra.mxu0 0.0
    %486 = vmatprep.subr.mxu0 0.0
    %487 = vmatpush1.msra.mxu0 0.0
    %488 = vmatprep.subr.mxu0 0.0
    %489 = vmatpush1.msra.mxu0 0.0
    %490 = vmatprep.subr.mxu0 0.0
    %491 = vmatpush1.msra.mxu0 0.0
    %492 = vmatprep.subr.mxu0 0.0
    %493 = vmatpush1.msra.mxu0 0.0
    %494 = vmatprep.subr.mxu0 0.0
    %495 = vmatpush1.msra.mxu0 0.0
    %496 = vmatprep.subr.mxu0 0.0
    %497 = vmatpush1.msra.mxu0 0.0
    %498 = vmatprep.subr.mxu0 0.0
    %499 = vmatpush1.msra.mxu0 0.0
    %500 = vmatprep.subr.mxu0 0.0
    %501 = vmatpush1.msra.mxu0 0.0
    %502 = vmatprep.subr.mxu0 0.0
    %503 = vmatpush1.msra.mxu0 0.0
    %504 = vmatprep.subr.mxu0 0.0
    %505 = vmatpush1.msra.mxu0 0.0
    %506 = vmatprep.subr.mxu0 0.0
    %507 = vmatpush1.msra.mxu0 0.0
    %508 = vmatprep.subr.mxu0 0.0
    %509 = vmatpush1.msra.mxu0 0.0
    %510 = vmatprep.subr.mxu0 0.0
    %511 = vmatpush1.msra.mxu0 0.0
    %512 = vmatprep.subr.mxu0 0.0
    %513 = vmatpush1.msra.mxu0 0.0
    %514 = vmatprep.subr.mxu0 0.0
    %515 = vmatpush1.msra.mxu0 0.0
    %516 = vmatprep.subr.mxu0 0.0
    %517 = vmatpush1.msra.mxu0 0.0
    %518 = vmatprep.subr.mxu0 0.0
    %519 = vmatpush1.msra.mxu0 0.0
    %520 = vmatprep.subr.mxu0 0.0
    %521 = vmatpush1.msra.mxu0 0.0
    %522 = vmatprep.subr.mxu0 0.0
    %523 = vmatpush1.msra.mxu0 0.0
    %524 = vmatprep.mubr.f32.mxu0 0.0
    %525 = vmatmul.mubr.f32.gmra.mrb[0].mxu0 %v458
    %v526 = vpop.f32.mrb[0].mxu0
    %v527 = vadd.f32 %v190, %v526
    %v528 = vpop.f32.mrb[0].mxu0
    %v529 = vadd.f32 %v192, %v528
    %530 = vdwg.mxu0
    %v531 = vxor.u32 %v527, 2147483648
    %v532 = vxor.u32 %v529, 2147483648
    %v533 = vmul.f32 %v531, 1.442695
    %v534 = vpow.pop %v533
    %v535 = vmul.f32 %v532, 1.442695
    %v536 = vpow.pop %v535
    %v537 = vadd.f32 %v534, 1.0
    %v538 = vadd.f32 %v536, 1.0
    %v539 = vrcp.pop %v537
    %v540 = vmul.f32 1.0, %v539
    %v541 = vrcp.pop %v538
    %v542 = vmul.f32 1.0, %v541
    %v543 = vtanh.pop %v529
    %v544 = vmul.f32 %v540, %v450
    %546 = vrot.lane.b32.xlu0 %v543, 64
    %v547 = vpop.permute.xlu0 %546
    %v549 = vmul.f32 %v540, %v547
    %551 = vrot.lane.b32.xlu0 %v549, 64
    %v552 = vpop.permute.xlu0 %551
    %v554 = vadd.f32 %v544, %v552
    %v555 = vtanh.pop %v554
    %557 = vrot.lane.b32.xlu0 %v555, 64
    %v558 = vpop.permute.xlu0 %557
    %v560 = vmul.f32 %v542, %v558
    %v562 = vsel %vm248, %v560, 0
    %564 = vmatprep.subr.mxu0 %v225
    %565 = vmatpush1.msra.mxu0 %v224
    %566 = vmatprep.subr.mxu0 %v227
    %567 = vmatpush1.msra.mxu0 %v226
    %568 = vmatprep.subr.mxu0 %v229
    %569 = vmatpush1.msra.mxu0 %v228
    %570 = vmatprep.subr.mxu0 %v231
    %571 = vmatpush1.msra.mxu0 %v230
    %572 = vmatprep.subr.mxu0 %v233
    %573 = vmatpush1.msra.mxu0 %v232
    %574 = vmatprep.subr.mxu0 %v235
    %575 = vmatpush1.msra.mxu0 %v234
    %576 = vmatprep.subr.mxu0 %v237
    %577 = vmatpush1.msra.mxu0 %v236
    %578 = vmatprep.subr.mxu0 %v239
    %579 = vmatpush1.msra.mxu0 %v238
    %580 = vmatprep.subr.mxu0 0.0
    %581 = vmatpush1.msra.mxu0 0.0
    %582 = vmatprep.subr.mxu0 0.0
    %583 = vmatpush1.msra.mxu0 0.0
    %584 = vmatprep.subr.mxu0 0.0
    %585 = vmatpush1.msra.mxu0 0.0
    %586 = vmatprep.subr.mxu0 0.0
    %587 = vmatpush1.msra.mxu0 0.0
    %588 = vmatprep.subr.mxu0 0.0
    %589 = vmatpush1.msra.mxu0 0.0
    %590 = vmatprep.subr.mxu0 0.0
    %591 = vmatpush1.msra.mxu0 0.0
    %592 = vmatprep.subr.mxu0 0.0
    %593 = vmatpush1.msra.mxu0 0.0
    %594 = vmatprep.subr.mxu0 0.0
    %595 = vmatpush1.msra.mxu0 0.0
    %596 = vmatprep.subr.mxu0 0.0
    %597 = vmatpush1.msra.mxu0 0.0
    %598 = vmatprep.subr.mxu0 0.0
    %599 = vmatpush1.msra.mxu0 0.0
    %600 = vmatprep.subr.mxu0 0.0
    %601 = vmatpush1.msra.mxu0 0.0
    %602 = vmatprep.subr.mxu0 0.0
    %603 = vmatpush1.msra.mxu0 0.0
    %604 = vmatprep.subr.mxu0 0.0
    %605 = vmatpush1.msra.mxu0 0.0
    %606 = vmatprep.subr.mxu0 0.0
    %607 = vmatpush1.msra.mxu0 0.0
    %608 = vmatprep.subr.mxu0 0.0
    %609 = vmatpush1.msra.mxu0 0.0
    %610 = vmatprep.subr.mxu0 0.0
    %611 = vmatpush1.msra.mxu0 0.0
    %612 = vmatprep.subr.mxu0 0.0
    %613 = vmatpush1.msra.mxu0 0.0
    %614 = vmatprep.subr.mxu0 0.0
    %615 = vmatpush1.msra.mxu0 0.0
    %616 = vmatprep.subr.mxu0 0.0
    %617 = vmatpush1.msra.mxu0 0.0
    %618 = vmatprep.subr.mxu0 0.0
    %619 = vmatpush1.msra.mxu0 0.0
    %620 = vmatprep.subr.mxu0 0.0
    %621 = vmatpush1.msra.mxu0 0.0
    %622 = vmatprep.subr.mxu0 0.0
    %623 = vmatpush1.msra.mxu0 0.0
    %624 = vmatprep.subr.mxu0 0.0
    %625 = vmatpush1.msra.mxu0 0.0
    %626 = vmatprep.subr.mxu0 0.0
    %627 = vmatpush1.msra.mxu0 0.0
    %628 = vmatprep.mubr.f32.mxu0 0.0
    %629 = vmatmul.mubr.f32.gmra.mrb[0].mxu0 %v562
    %v630 = vpop.f32.mrb[0].mxu0
    %v631 = vadd.f32 %v196, %v630
    %v632 = vpop.f32.mrb[0].mxu0
    %v633 = vadd.f32 %v198, %v632
    %634 = vdwg.mxu0
    %v635 = vxor.u32 %v631, 2147483648
    %v636 = vxor.u32 %v633, 2147483648
    %v637 = vmul.f32 %v635, 1.442695
    %v638 = vpow.pop %v637
    %v639 = vmul.f32 %v636, 1.442695
    %v640 = vpow.pop %v639
    %v641 = vadd.f32 %v638, 1.0
    %v642 = vadd.f32 %v640, 1.0
    %v643 = vrcp.pop %v641
    %v644 = vmul.f32 1.0, %v643
    %v645 = vrcp.pop %v642
    %v646 = vmul.f32 1.0, %v645
    %v647 = vtanh.pop %v633
    %v648 = vmul.f32 %v644, %v554
    %650 = vrot.lane.b32.xlu0 %v647, 64
    %v651 = vpop.permute.xlu0 %650
    %v653 = vmul.f32 %v644, %v651
    %655 = vrot.lane.b32.xlu0 %v653, 64
    %v656 = vpop.permute.xlu0 %655
    %v658 = vadd.f32 %v648, %v656
    %v659 = vtanh.pop %v658
    %661 = vrot.lane.b32.xlu0 %v659, 64
    %v662 = vpop.permute.xlu0 %661
    %v664 = vmul.f32 %v646, %v662
    %v666 = vsel %vm248, %v664, 0
    %668 = vmatprep.subr.mxu0 %v225
    %669 = vmatpush1.msra.mxu0 %v224
    %670 = vmatprep.subr.mxu0 %v227
    %671 = vmatpush1.msra.mxu0 %v226
    %672 = vmatprep.subr.mxu0 %v229
    %673 = vmatpush1.msra.mxu0 %v228
    %674 = vmatprep.subr.mxu0 %v231
    %675 = vmatpush1.msra.mxu0 %v230
    %676 = vmatprep.subr.mxu0 %v233
    %677 = vmatpush1.msra.mxu0 %v232
    %678 = vmatprep.subr.mxu0 %v235
    %679 = vmatpush1.msra.mxu0 %v234
    %680 = vmatprep.subr.mxu0 %v237
    %681 = vmatpush1.msra.mxu0 %v236
    %682 = vmatprep.subr.mxu0 %v239
    %683 = vmatpush1.msra.mxu0 %v238
    %684 = vmatprep.subr.mxu0 0.0
    %685 = vmatpush1.msra.mxu0 0.0
    %686 = vmatprep.subr.mxu0 0.0
    %687 = vmatpush1.msra.mxu0 0.0
    %688 = vmatprep.subr.mxu0 0.0
    %689 = vmatpush1.msra.mxu0 0.0
    %690 = vmatprep.subr.mxu0 0.0
    %691 = vmatpush1.msra.mxu0 0.0
    %692 = vmatprep.subr.mxu0 0.0
    %693 = vmatpush1.msra.mxu0 0.0
    %694 = vmatprep.subr.mxu0 0.0
    %695 = vmatpush1.msra.mxu0 0.0
    %696 = vmatprep.subr.mxu0 0.0
    %697 = vmatpush1.msra.mxu0 0.0
    %698 = vmatprep.subr.mxu0 0.0
    %699 = vmatpush1.msra.mxu0 0.0
    %700 = vmatprep.subr.mxu0 0.0
    %701 = vmatpush1.msra.mxu0 0.0
    %702 = vmatprep.subr.mxu0 0.0
    %703 = vmatpush1.msra.mxu0 0.0
    %704 = vmatprep.subr.mxu0 0.0
    %705 = vmatpush1.msra.mxu0 0.0
    %706 = vmatprep.subr.mxu0 0.0
    %707 = vmatpush1.msra.mxu0 0.0
    %708 = vmatprep.subr.mxu0 0.0
    %709 = vmatpush1.msra.mxu0 0.0
    %710 = vmatprep.subr.mxu0 0.0
    %711 = vmatpush1.msra.mxu0 0.0
    %712 = vmatprep.subr.mxu0 0.0
    %713 = vmatpush1.msra.mxu0 0.0
    %714 = vmatprep.subr.mxu0 0.0
    %715 = vmatpush1.msra.mxu0 0.0
    %716 = vmatprep.subr.mxu0 0.0
    %717 = vmatpush1.msra.mxu0 0.0
    %718 = vmatprep.subr.mxu0 0.0
    %719 = vmatpush1.msra.mxu0 0.0
    %720 = vmatprep.subr.mxu0 0.0
    %721 = vmatpush1.msra.mxu0 0.0
    %722 = vmatprep.subr.mxu0 0.0
    %723 = vmatpush1.msra.mxu0 0.0
    %724 = vmatprep.subr.mxu0 0.0
    %725 = vmatpush1.msra.mxu0 0.0
    %726 = vmatprep.subr.mxu0 0.0
    %727 = vmatpush1.msra.mxu0 0.0
    %728 = vmatprep.subr.mxu0 0.0
    %729 = vmatpush1.msra.mxu0 0.0
    %730 = vmatprep.subr.mxu0 0.0
    %731 = vmatpush1.msra.mxu0 0.0
    %732 = vmatprep.mubr.f32.mxu0 0.0
    %733 = vmatmul.mubr.f32.gmra.mrb[0].mxu0 %v666
    %v734 = vpop.f32.mrb[0].mxu0
    %v735 = vadd.f32 %v202, %v734
    %v736 = vpop.f32.mrb[0].mxu0
    %v737 = vadd.f32 %v204, %v736
    %738 = vdwg.mxu0
    %v739 = vxor.u32 %v735, 2147483648
    %v740 = vxor.u32 %v737, 2147483648
    %v741 = vmul.f32 %v739, 1.442695
    %v742 = vpow.pop %v741
    %v743 = vmul.f32 %v740, 1.442695
    %v744 = vpow.pop %v743
    %v745 = vadd.f32 %v742, 1.0
    %v746 = vadd.f32 %v744, 1.0
    %v747 = vrcp.pop %v745
    %v748 = vmul.f32 1.0, %v747
    %v749 = vrcp.pop %v746
    %v750 = vmul.f32 1.0, %v749
    %v751 = vtanh.pop %v737
    %v752 = vmul.f32 %v748, %v658
    %754 = vrot.lane.b32.xlu0 %v751, 64
    %v755 = vpop.permute.xlu0 %754
    %v757 = vmul.f32 %v748, %v755
    %759 = vrot.lane.b32.xlu0 %v757, 64
    %v760 = vpop.permute.xlu0 %759
    %v762 = vadd.f32 %v752, %v760
    %v763 = vtanh.pop %v762
    %765 = vrot.lane.b32.xlu0 %v763, 64
    %v766 = vpop.permute.xlu0 %765
    %v768 = vmul.f32 %v750, %v766
    %v770 = vsel %vm248, %v768, 0
    %772 = vmatprep.subr.mxu0 %v225
    %773 = vmatpush1.msra.mxu0 %v224
    %774 = vmatprep.subr.mxu0 %v227
    %775 = vmatpush1.msra.mxu0 %v226
    %776 = vmatprep.subr.mxu0 %v229
    %777 = vmatpush1.msra.mxu0 %v228
    %778 = vmatprep.subr.mxu0 %v231
    %779 = vmatpush1.msra.mxu0 %v230
    %780 = vmatprep.subr.mxu0 %v233
    %781 = vmatpush1.msra.mxu0 %v232
    %782 = vmatprep.subr.mxu0 %v235
    %783 = vmatpush1.msra.mxu0 %v234
    %784 = vmatprep.subr.mxu0 %v237
    %785 = vmatpush1.msra.mxu0 %v236
    %786 = vmatprep.subr.mxu0 %v239
    %787 = vmatpush1.msra.mxu0 %v238
    %788 = vmatprep.subr.mxu0 0.0
    %789 = vmatpush1.msra.mxu0 0.0
    %790 = vmatprep.subr.mxu0 0.0
    %791 = vmatpush1.msra.mxu0 0.0
    %792 = vmatprep.subr.mxu0 0.0
    %793 = vmatpush1.msra.mxu0 0.0
    %794 = vmatprep.subr.mxu0 0.0
    %795 = vmatpush1.msra.mxu0 0.0
    %796 = vmatprep.subr.mxu0 0.0
    %797 = vmatpush1.msra.mxu0 0.0
    %798 = vmatprep.subr.mxu0 0.0
    %799 = vmatpush1.msra.mxu0 0.0
    %800 = vmatprep.subr.mxu0 0.0
    %801 = vmatpush1.msra.mxu0 0.0
    %802 = vmatprep.subr.mxu0 0.0
    %803 = vmatpush1.msra.mxu0 0.0
    %804 = vmatprep.subr.mxu0 0.0
    %805 = vmatpush1.msra.mxu0 0.0
    %806 = vmatprep.subr.mxu0 0.0
    %807 = vmatpush1.msra.mxu0 0.0
    %808 = vmatprep.subr.mxu0 0.0
    %809 = vmatpush1.msra.mxu0 0.0
    %810 = vmatprep.subr.mxu0 0.0
    %811 = vmatpush1.msra.mxu0 0.0
    %812 = vmatprep.subr.mxu0 0.0
    %813 = vmatpush1.msra.mxu0 0.0
    %814 = vmatprep.subr.mxu0 0.0
    %815 = vmatpush1.msra.mxu0 0.0
    %816 = vmatprep.subr.mxu0 0.0
    %817 = vmatpush1.msra.mxu0 0.0
    %818 = vmatprep.subr.mxu0 0.0
    %819 = vmatpush1.msra.mxu0 0.0
    %820 = vmatprep.subr.mxu0 0.0
    %821 = vmatpush1.msra.mxu0 0.0
    %822 = vmatprep.subr.mxu0 0.0
    %823 = vmatpush1.msra.mxu0 0.0
    %824 = vmatprep.subr.mxu0 0.0
    %825 = vmatpush1.msra.mxu0 0.0
    %826 = vmatprep.subr.mxu0 0.0
    %827 = vmatpush1.msra.mxu0 0.0
    %828 = vmatprep.subr.mxu0 0.0
    %829 = vmatpush1.msra.mxu0 0.0
    %830 = vmatprep.subr.mxu0 0.0
    %831 = vmatpush1.msra.mxu0 0.0
    %832 = vmatprep.subr.mxu0 0.0
    %833 = vmatpush1.msra.mxu0 0.0
    %834 = vmatprep.subr.mxu0 0.0
    %835 = vmatpush1.msra.mxu0 0.0
    %836 = vmatprep.mubr.f32.mxu0 0.0
    %837 = vmatmul.mubr.f32.gmra.mrb[0].mxu0 %v770
    %v838 = vpop.f32.mrb[0].mxu0
    %v839 = vadd.f32 %v208, %v838
    %v840 = vpop.f32.mrb[0].mxu0
    %v841 = vadd.f32 %v210, %v840
    %842 = vdwg.mxu0
    %v843 = vxor.u32 %v839, 2147483648
    %v844 = vxor.u32 %v841, 2147483648
    %v845 = vmul.f32 %v843, 1.442695
    %v846 = vpow.pop %v845
    %v847 = vmul.f32 %v844, 1.442695
    %v848 = vpow.pop %v847
    %v849 = vadd.f32 %v846, 1.0
    %v850 = vadd.f32 %v848, 1.0
    %v851 = vrcp.pop %v849
    %v852 = vmul.f32 1.0, %v851
    %v853 = vrcp.pop %v850
    %v854 = vmul.f32 1.0, %v853
    %v855 = vtanh.pop %v841
    %v856 = vmul.f32 %v852, %v762
    %858 = vrot.lane.b32.xlu0 %v855, 64
    %v859 = vpop.permute.xlu0 %858
    %v861 = vmul.f32 %v852, %v859
    %863 = vrot.lane.b32.xlu0 %v861, 64
    %v864 = vpop.permute.xlu0 %863
    %v866 = vadd.f32 %v856, %v864
    %v867 = vtanh.pop %v866
    %869 = vrot.lane.b32.xlu0 %v867, 64
    %v870 = vpop.permute.xlu0 %869
    %v872 = vmul.f32 %v854, %v870
    %v874 = vsel %vm248, %v872, 0
    %876 = vmatprep.subr.mxu0 %v225
    %877 = vmatpush1.msra.mxu0 %v224
    %878 = vmatprep.subr.mxu0 %v227
    %879 = vmatpush1.msra.mxu0 %v226
    %880 = vmatprep.subr.mxu0 %v229
    %881 = vmatpush1.msra.mxu0 %v228
    %882 = vmatprep.subr.mxu0 %v231
    %883 = vmatpush1.msra.mxu0 %v230
    %884 = vmatprep.subr.mxu0 %v233
    %885 = vmatpush1.msra.mxu0 %v232
    %886 = vmatprep.subr.mxu0 %v235
    %887 = vmatpush1.msra.mxu0 %v234
    %888 = vmatprep.subr.mxu0 %v237
    %889 = vmatpush1.msra.mxu0 %v236
    %890 = vmatprep.subr.mxu0 %v239
    %891 = vmatpush1.msra.mxu0 %v238
    %892 = vmatprep.subr.mxu0 0.0
    %893 = vmatpush1.msra.mxu0 0.0
    %894 = vmatprep.subr.mxu0 0.0
    %895 = vmatpush1.msra.mxu0 0.0
    %896 = vmatprep.subr.mxu0 0.0
    %897 = vmatpush1.msra.mxu0 0.0
    %898 = vmatprep.subr.mxu0 0.0
    %899 = vmatpush1.msra.mxu0 0.0
    %900 = vmatprep.subr.mxu0 0.0
    %901 = vmatpush1.msra.mxu0 0.0
    %902 = vmatprep.subr.mxu0 0.0
    %903 = vmatpush1.msra.mxu0 0.0
    %904 = vmatprep.subr.mxu0 0.0
    %905 = vmatpush1.msra.mxu0 0.0
    %906 = vmatprep.subr.mxu0 0.0
    %907 = vmatpush1.msra.mxu0 0.0
    %908 = vmatprep.subr.mxu0 0.0
    %909 = vmatpush1.msra.mxu0 0.0
    %910 = vmatprep.subr.mxu0 0.0
    %911 = vmatpush1.msra.mxu0 0.0
    %912 = vmatprep.subr.mxu0 0.0
    %913 = vmatpush1.msra.mxu0 0.0
    %914 = vmatprep.subr.mxu0 0.0
    %915 = vmatpush1.msra.mxu0 0.0
    %916 = vmatprep.subr.mxu0 0.0
    %917 = vmatpush1.msra.mxu0 0.0
    %918 = vmatprep.subr.mxu0 0.0
    %919 = vmatpush1.msra.mxu0 0.0
    %920 = vmatprep.subr.mxu0 0.0
    %921 = vmatpush1.msra.mxu0 0.0
    %922 = vmatprep.subr.mxu0 0.0
    %923 = vmatpush1.msra.mxu0 0.0
    %924 = vmatprep.subr.mxu0 0.0
    %925 = vmatpush1.msra.mxu0 0.0
    %926 = vmatprep.subr.mxu0 0.0
    %927 = vmatpush1.msra.mxu0 0.0
    %928 = vmatprep.subr.mxu0 0.0
    %929 = vmatpush1.msra.mxu0 0.0
    %930 = vmatprep.subr.mxu0 0.0
    %931 = vmatpush1.msra.mxu0 0.0
    %932 = vmatprep.subr.mxu0 0.0
    %933 = vmatpush1.msra.mxu0 0.0
    %934 = vmatprep.subr.mxu0 0.0
    %935 = vmatpush1.msra.mxu0 0.0
    %936 = vmatprep.subr.mxu0 0.0
    %937 = vmatpush1.msra.mxu0 0.0
    %938 = vmatprep.subr.mxu0 0.0
    %939 = vmatpush1.msra.mxu0 0.0
    %940 = vmatprep.mubr.f32.mxu0 0.0
    %941 = vmatmul.mubr.f32.gmra.mrb[0].mxu0 %v874
    %v942 = vpop.f32.mrb[0].mxu0
    %v943 = vadd.f32 %v214, %v942
    %v944 = vpop.f32.mrb[0].mxu0
    %v945 = vadd.f32 %v216, %v944
    %946 = vdwg.mxu0
    %v947 = vxor.u32 %v943, 2147483648
    %v948 = vxor.u32 %v945, 2147483648
    %v949 = vmul.f32 %v947, 1.442695
    %v950 = vpow.pop %v949
    %v951 = vmul.f32 %v948, 1.442695
    %v952 = vpow.pop %v951
    %v953 = vadd.f32 %v950, 1.0
    %v954 = vadd.f32 %v952, 1.0
    %v955 = vrcp.pop %v953
    %v956 = vmul.f32 1.0, %v955
    %v957 = vrcp.pop %v954
    %v958 = vmul.f32 1.0, %v957
    %v959 = vtanh.pop %v945
    %v960 = vmul.f32 %v956, %v866
    %962 = vrot.lane.b32.xlu0 %v959, 64
    %v963 = vpop.permute.xlu0 %962
    %v965 = vmul.f32 %v956, %v963
    %967 = vrot.lane.b32.xlu0 %v965, 64
    %v968 = vpop.permute.xlu0 %967
    %v970 = vadd.f32 %v960, %v968
    %v971 = vtanh.pop %v970
    %973 = vrot.lane.b32.xlu0 %v971, 64
    %v974 = vpop.permute.xlu0 %973
    %v976 = vmul.f32 %v958, %v974
    %v978 = vsel %vm248, %v976, 0
    %980 = vmatprep.subr.mxu0 %v225
    %981 = vmatpush1.msra.mxu0 %v224
    %982 = vmatprep.subr.mxu0 %v227
    %983 = vmatpush1.msra.mxu0 %v226
    %984 = vmatprep.subr.mxu0 %v229
    %985 = vmatpush1.msra.mxu0 %v228
    %986 = vmatprep.subr.mxu0 %v231
    %987 = vmatpush1.msra.mxu0 %v230
    %988 = vmatprep.subr.mxu0 %v233
    %989 = vmatpush1.msra.mxu0 %v232
    %990 = vmatprep.subr.mxu0 %v235
    %991 = vmatpush1.msra.mxu0 %v234
    %992 = vmatprep.subr.mxu0 %v237
    %993 = vmatpush1.msra.mxu0 %v236
    %994 = vmatprep.subr.mxu0 %v239
    %995 = vmatpush1.msra.mxu0 %v238
    %996 = vmatprep.subr.mxu0 0.0
    %997 = vmatpush1.msra.mxu0 0.0
    %998 = vmatprep.subr.mxu0 0.0
    %999 = vmatpush1.msra.mxu0 0.0
    %1000 = vmatprep.subr.mxu0 0.0
    %1001 = vmatpush1.msra.mxu0 0.0
    %1002 = vmatprep.subr.mxu0 0.0
    %1003 = vmatpush1.msra.mxu0 0.0
    %1004 = vmatprep.subr.mxu0 0.0
    %1005 = vmatpush1.msra.mxu0 0.0
    %1006 = vmatprep.subr.mxu0 0.0
    %1007 = vmatpush1.msra.mxu0 0.0
    %1008 = vmatprep.subr.mxu0 0.0
    %1009 = vmatpush1.msra.mxu0 0.0
    %1010 = vmatprep.subr.mxu0 0.0
    %1011 = vmatpush1.msra.mxu0 0.0
    %1012 = vmatprep.subr.mxu0 0.0
    %1013 = vmatpush1.msra.mxu0 0.0
    %1014 = vmatprep.subr.mxu0 0.0
    %1015 = vmatpush1.msra.mxu0 0.0
    %1016 = vmatprep.subr.mxu0 0.0
    %1017 = vmatpush1.msra.mxu0 0.0
    %1018 = vmatprep.subr.mxu0 0.0
    %1019 = vmatpush1.msra.mxu0 0.0
    %1020 = vmatprep.subr.mxu0 0.0
    %1021 = vmatpush1.msra.mxu0 0.0
    %1022 = vmatprep.subr.mxu0 0.0
    %1023 = vmatpush1.msra.mxu0 0.0
    %1024 = vmatprep.subr.mxu0 0.0
    %1025 = vmatpush1.msra.mxu0 0.0
    %1026 = vmatprep.subr.mxu0 0.0
    %1027 = vmatpush1.msra.mxu0 0.0
    %1028 = vmatprep.subr.mxu0 0.0
    %1029 = vmatpush1.msra.mxu0 0.0
    %1030 = vmatprep.subr.mxu0 0.0
    %1031 = vmatpush1.msra.mxu0 0.0
    %1032 = vmatprep.subr.mxu0 0.0
    %1033 = vmatpush1.msra.mxu0 0.0
    %1034 = vmatprep.subr.mxu0 0.0
    %1035 = vmatpush1.msra.mxu0 0.0
    %1036 = vmatprep.subr.mxu0 0.0
    %1037 = vmatpush1.msra.mxu0 0.0
    %1038 = vmatprep.subr.mxu0 0.0
    %1039 = vmatpush1.msra.mxu0 0.0
    %1040 = vmatprep.subr.mxu0 0.0
    %1041 = vmatpush1.msra.mxu0 0.0
    %1042 = vmatprep.subr.mxu0 0.0
    %1043 = vmatpush1.msra.mxu0 0.0
    %1044 = vmatprep.mubr.f32.mxu0 0.0
    %1045 = vmatmul.mubr.f32.gmra.mrb[0].mxu0 %v978
    %v1046 = vpop.f32.mrb[0].mxu0
    %v1047 = vadd.f32 %v220, %v1046
    %v1048 = vpop.f32.mrb[0].mxu0
    %v1049 = vadd.f32 %v222, %v1048
    %1050 = vdwg.mxu0
    %v1051 = vxor.u32 %v1047, 2147483648
    %v1052 = vxor.u32 %v1049, 2147483648
    %v1053 = vmul.f32 %v1051, 1.442695
    %v1054 = vpow.pop %v1053
    %v1055 = vmul.f32 %v1052, 1.442695
    %v1056 = vpow.pop %v1055
    %v1057 = vadd.f32 %v1054, 1.0
    %v1058 = vadd.f32 %v1056, 1.0
    %v1059 = vrcp.pop %v1057
    %v1060 = vmul.f32 1.0, %v1059
    %v1061 = vrcp.pop %v1058
    %v1062 = vmul.f32 1.0, %v1061
    %v1063 = vtanh.pop %v1049
    %v1064 = vmul.f32 %v1060, %v970
    %1066 = vrot.lane.b32.xlu0 %v1063, 64
    %v1067 = vpop.permute.xlu0 %1066
    %v1069 = vmul.f32 %v1060, %v1067
    %1071 = vrot.lane.b32.xlu0 %v1069, 64
    %v1072 = vpop.permute.xlu0 %1071
    %v1074 = vadd.f32 %v1064, %v1072
    %v1075 = vtanh.pop %v1074
    %1077 = vrot.lane.b32.xlu0 %v1075, 64
    %v1078 = vpop.permute.xlu0 %1077
    %v1080 = vmul.f32 %v1062, %v1078
    %v1081 = vlaneseq
    %v1082 = vshrl.u32 %v1081, 7
    %v1083 = vsub.s32 3, %v1082
    %v1084 = vrot.slane %v50, %v1083
    %v1086 = vsel %vm248, %v1080, 0
    %1088 = vmatprep.subr.mxu0 0.0
    %1089 = vmatpush1.msra.mxu0 %v240
    %1090 = vmatprep.subr.mxu0 0.0
    %1091 = vmatpush1.msra.mxu0 %v241
    %1092 = vmatprep.subr.mxu0 0.0
    %1093 = vmatpush1.msra.mxu0 %v242
    %1094 = vmatprep.subr.mxu0 0.0
    %1095 = vmatpush1.msra.mxu0 %v243
    %1096 = vmatprep.subr.mxu0 0.0
    %1097 = vmatpush1.msra.mxu0 %v244
    %1098 = vmatprep.subr.mxu0 0.0
    %1099 = vmatpush1.msra.mxu0 %v245
    %1100 = vmatprep.subr.mxu0 0.0
    %1101 = vmatpush1.msra.mxu0 %v246
    %1102 = vmatprep.subr.mxu0 0.0
    %1103 = vmatpush1.msra.mxu0 %v247
    %1104 = vmatprep.subr.mxu0 0.0
    %1105 = vmatpush1.msra.mxu0 0.0
    %1106 = vmatprep.subr.mxu0 0.0
    %1107 = vmatpush1.msra.mxu0 0.0
    %1108 = vmatprep.subr.mxu0 0.0
    %1109 = vmatpush1.msra.mxu0 0.0
    %1110 = vmatprep.subr.mxu0 0.0
    %1111 = vmatpush1.msra.mxu0 0.0
    %1112 = vmatprep.subr.mxu0 0.0
    %1113 = vmatpush1.msra.mxu0 0.0
    %1114 = vmatprep.subr.mxu0 0.0
    %1115 = vmatpush1.msra.mxu0 0.0
    %1116 = vmatprep.subr.mxu0 0.0
    %1117 = vmatpush1.msra.mxu0 0.0
    %1118 = vmatprep.subr.mxu0 0.0
    %1119 = vmatpush1.msra.mxu0 0.0
    %1120 = vmatprep.subr.mxu0 0.0
    %1121 = vmatpush1.msra.mxu0 0.0
    %1122 = vmatprep.subr.mxu0 0.0
    %1123 = vmatpush1.msra.mxu0 0.0
    %1124 = vmatprep.subr.mxu0 0.0
    %1125 = vmatpush1.msra.mxu0 0.0
    %1126 = vmatprep.subr.mxu0 0.0
    %1127 = vmatpush1.msra.mxu0 0.0
    %1128 = vmatprep.subr.mxu0 0.0
    %1129 = vmatpush1.msra.mxu0 0.0
    %1130 = vmatprep.subr.mxu0 0.0
    %1131 = vmatpush1.msra.mxu0 0.0
    %1132 = vmatprep.subr.mxu0 0.0
    %1133 = vmatpush1.msra.mxu0 0.0
    %1134 = vmatprep.subr.mxu0 0.0
    %1135 = vmatpush1.msra.mxu0 0.0
    %1136 = vmatprep.subr.mxu0 0.0
    %1137 = vmatpush1.msra.mxu0 0.0
    %1138 = vmatprep.subr.mxu0 0.0
    %1139 = vmatpush1.msra.mxu0 0.0
    %1140 = vmatprep.subr.mxu0 0.0
    %1141 = vmatpush1.msra.mxu0 0.0
    %1142 = vmatprep.subr.mxu0 0.0
    %1143 = vmatpush1.msra.mxu0 0.0
    %1144 = vmatprep.subr.mxu0 0.0
    %1145 = vmatpush1.msra.mxu0 0.0
    %1146 = vmatprep.subr.mxu0 0.0
    %1147 = vmatpush1.msra.mxu0 0.0
    %1148 = vmatprep.subr.mxu0 0.0
    %1149 = vmatpush1.msra.mxu0 0.0
    %1150 = vmatprep.subr.mxu0 0.0
    %1151 = vmatpush1.msra.mxu0 0.0
    %1152 = vmatprep.mubr.f32.mxu0 0.0
    %1153 = vmatmul.mubr.f32.gmra.mrb[0].mxu0 %v1086
    %v1154 = vpop.f32.mrb[0].mxu0
    %v1155 = vadd.f32 %v1084, %v1154
    %v1156 = vpop.f32.mrb[0].mxu0
    %1157 = vdwg.mxu0
    %1158 = vmax.xlane.f32.xlu0 %v1155
    %v1159 = vpop.xlane.xlu0 %1158
    %v1160 = vsub.f32 %v1155, %v1159
    %v1161 = vmul.f32 %v1160, 1.442695
    %v1162 = vpow.pop %v1161
    %1163 = vadd.xlane.f32.xlu0 %v1162
    %v1164 = vpop.xlane.xlu0 %1163
    %v1165 = vlog2.pop %v1164
    %v1166 = vmul.f32 %v1165, 0.6931472
    %v1167 = vadd.f32 %v1166, %v1159
    %v1168 = vpack.c.bf16 %v1080, %v1080
    %v1169 = vld [vmem:[#allocation5] sm:$0xff]
    %v1170 = vld [vmem:[#allocation5 + $0x8] sm:$0xff]
    %v1171 = vld [vmem:[#allocation5 + $0x10] sm:$0xff]
    %v1172 = vld [vmem:[#allocation5 + $0x18] sm:$0xff]
    %v1173 = vld [vmem:[#allocation5 + $0x20] sm:$0xff]
    %v1174 = vld [vmem:[#allocation5 + $0x28] sm:$0xff]
    %v1175 = vld [vmem:[#allocation5 + $0x30] sm:$0xff]
    %v1176 = vld [vmem:[#allocation5 + $0x38] sm:$0xff]
    %v1177 = vlaneseq
    %v1178 = vshrl.u32 %v1177, 7
    %v1179 = vsub.s32 1, %v1178
    %v1180 = vrot.slane %v50, %v1179
    %v1181 = vlaneseq
    %v1182 = vshrl.u32 %v1181, 7
    %v1183 = vsub.s32 5, %v1182
    %v1184 = vrot.slane %v50, %v1183
    %v1187 = vlaneseq
    %v1188 = vshrl.u32 %v1187, 7
    %v1189 = vsub.s32 1, %v1188
    %v1190 = vrot.slane %v1180, %v1189
    %v1191 = vlaneseq
    %v1192 = vshrl.u32 %v1191, 7
    %v1193 = vsub.s32 1, %v1192
    %v1194 = vrot.slane %v1184, %v1193
    %v1203 = vunpack.c.l.b16 %v1169
    %v1204 = vunpack.c.h.b16 %v1169
    %v1205 = vunpack.c.l.b16 %v1170
    %v1206 = vunpack.c.h.b16 %v1170
    %v1207 = vunpack.c.l.b16 %v1171
    %v1208 = vunpack.c.h.b16 %v1171
    %v1209 = vunpack.c.l.b16 %v1172
    %v1210 = vunpack.c.h.b16 %v1172
    %v1211 = vunpack.c.l.b16 %v1173
    %v1212 = vunpack.c.h.b16 %v1173
    %v1213 = vunpack.c.l.b16 %v1174
    %v1214 = vunpack.c.h.b16 %v1174
    %v1215 = vunpack.c.l.b16 %v1175
    %v1216 = vunpack.c.h.b16 %v1175
    %v1217 = vunpack.c.l.b16 %v1176
    %v1218 = vunpack.c.h.b16 %v1176
    %v1219 = vpack.c.b16 %v1205, %v1203
    %v1220 = vpack.c.b16 %v1206, %v1204
    %v1221 = vpack.c.b16 %v1209, %v1207
    %v1222 = vpack.c.b16 %v1210, %v1208
    %v1223 = vpack.c.b16 %v1213, %v1211
    %v1224 = vpack.c.b16 %v1214, %v1212
    %v1225 = vpack.c.b16 %v1217, %v1215
    %v1226 = vpack.c.b16 %v1218, %v1216
    %v1236 = vsel %vm248, %v1168, 0
    %1238 = vmatprep.subr.bf16.mxu0 %v1220
    %1239 = vmatpush1.bf16.msra.mxu0 %v1219
    %1240 = vmatprep.subr.bf16.mxu0 %v1222
    %1241 = vmatpush1.bf16.msra.mxu0 %v1221
    %1242 = vmatprep.subr.bf16.mxu0 %v1224
    %1243 = vmatpush1.bf16.msra.mxu0 %v1223
    %1244 = vmatprep.subr.bf16.mxu0 %v1226
    %1245 = vmatpush1.bf16.msra.mxu0 %v1225
    %1246 = vmatprep.subr.bf16.mxu0 0
    %1247 = vmatpush1.bf16.msra.mxu0 0
    %1248 = vmatprep.subr.bf16.mxu0 0
    %1249 = vmatpush1.bf16.msra.mxu0 0
    %1250 = vmatprep.subr.bf16.mxu0 0
    %1251 = vmatpush1.bf16.msra.mxu0 0
    %1252 = vmatprep.subr.bf16.mxu0 0
    %1253 = vmatpush1.bf16.msra.mxu0 0
    %1254 = vmatprep.subr.bf16.mxu0 0
    %1255 = vmatpush1.bf16.msra.mxu0 0
    %1256 = vmatprep.subr.bf16.mxu0 0
    %1257 = vmatpush1.bf16.msra.mxu0 0
    %1258 = vmatprep.subr.bf16.mxu0 0
    %1259 = vmatpush1.bf16.msra.mxu0 0
    %1260 = vmatprep.subr.bf16.mxu0 0
    %1261 = vmatpush1.bf16.msra.mxu0 0
    %1262 = vmatprep.subr.bf16.mxu0 0
    %1263 = vmatpush1.bf16.msra.mxu0 0
    %1264 = vmatprep.subr.bf16.mxu0 0
    %1265 = vmatpush1.bf16.msra.mxu0 0
    %1266 = vmatprep.subr.bf16.mxu0 0
    %1267 = vmatpush1.bf16.msra.mxu0 0
    %1268 = vmatprep.subr.bf16.mxu0 0
    %1269 = vmatpush1.bf16.msra.mxu0 0
    %1270 = vmatprep.mubr.bf16.mxu0 0
    %1271 = vmatmul.mubr.bf16.gmra.mrb[0].mxu0 %v1236
    %v1272 = vpop.f32.mrb[0].mxu0
    %v1273 = vadd.f32 %v1190, %v1272
    %v1274 = vpop.f32.mrb[0].mxu0
    %v1275 = vadd.f32 %v1194, %v1274
    %v1276 = vpop.f32.mrb[0].mxu0
    %v1277 = vpop.f32.mrb[0].mxu0
    %1278 = vdwg.mxu0
    %v1279 = vlaneseq
    %v1280 = vshrl.u32 %v1279, 7
    %v1281 = vsub.s32 2, %v1280
    %v1282 = vrot.slane %v50, %v1281
    %v1283 = vlaneseq
    %v1284 = vshrl.u32 %v1283, 7
    %v1285 = vsub.s32 6, %v1284
    %v1286 = vrot.slane %v50, %v1285
    %v1289 = vlaneseq
    %v1290 = vshrl.u32 %v1289, 7
    %v1291 = vsub.s32 2, %v1290
    %v1292 = vrot.slane %v1282, %v1291
    %v1293 = vlaneseq
    %v1294 = vshrl.u32 %v1293, 7
    %v1295 = vsub.s32 2, %v1294
    %v1296 = vrot.slane %v1286, %v1295
    %v1297 = vmul.f32 %v1167, %v1292
    %v1298 = vmul.f32 %v1167, %v1296
    %v1299 = vsub.f32 %v1273, %v1297
    %v1300 = vsub.f32 %v1275, %v1298
    %v1301 = vxor.u32 %v1299, 2147483648
    %v1302 = vxor.u32 %v1300, 2147483648
    %v1303 = vmul.f32 %v1301, 1.442695
    %v1304 = vpow.pop %v1303
    %v1305 = vmul.f32 %v1302, 1.442695
    %v1306 = vpow.pop %v1305
    %v1307 = vadd.f32 %v1304, 1.0
    %v1308 = vadd.f32 %v1306, 1.0
    %v1309 = vrcp.pop %v1307
    %v1310 = vmul.f32 1.0, %v1309
    %v1311 = vrcp.pop %v1308
    %v1312 = vmul.f32 1.0, %v1311
    %1313 = vst [vmem:[#allocation7] sm:$0xff] %v1310
    %1314 = vst [vmem:[#allocation7 + $0x8] sm:$0xff] %v1312
    // Predicated region
    $region30: #{tpu_custom_call.1} parent=1 // pred_check
      _
    $region31: #{tpu_custom_call.1} parent=1 // pred_check_branch
      %1316 = sbr.rel (0) target = $region33
    $region32: #{tpu_custom_call.1} parent=1 // pred_region
      %s1318 = ssub.s32 256, 256
      %1319 = vsyncadd [#allocation4], %s1318
      %s1321 = sshll.u32 [#allocation7], 4
      %s1322 = int_to_ptr.vmem [resolvable:$true] %s1321
      %1324 = dma.vmem_to_hbm [thread:$0]  %s1322, 256, %s5, [#allocation4]
    $region33: #{tpu_custom_call.1} parent=1 // pred_fallthru
      _
    // Predicated region
    $region34: #{tpu_custom_call.1} parent=1 // pred_check
      _
    $region35: #{tpu_custom_call.1} parent=1 // pred_check_branch
      %1326 = sbr.rel (0) target = $region37
    $region36: #{tpu_custom_call.1} parent=1 // pred_region
      %1327 = dma.done [#allocation4], 256
    $region37: #{tpu_custom_call.1} parent=1 // pred_fallthru
      _
    %1328 = vsyncpa [#allocation3], 1
    %1329 = vsyncpa [#allocation6], 1
    %1330 = vsyncpa [#allocation4], 1

</llo_original>
